<compile_context>
chip_gen: v5e
topology: v5e:2x2
jax: 0.10.0
libtpu: 0.0.40
codegen_flags: <defaults>
</compile_context>

<pallas_src>
import functools
import math

import jax
import jax.numpy as jnp
from jax.experimental import pallas as pl
from jax.experimental.pallas import tpu as pltpu


_VMEM = pl.BlockSpec(memory_space=pltpu.MemorySpace.VMEM)


# ----------------------------------------------------------------------------
# In-kernel building blocks (traced inline inside the fused kernel)
# ----------------------------------------------------------------------------
def _mha_core(q, k, v, num_heads, head_dim, approx_recip):
    """Multi-head attention core (no out-proj).

    q: (Lq, E), k/v: (Lk, E) already projected.  Returns the concatenated
    per-head outputs (Lq, E); the caller applies a single Wo matmul.
    """
    scale = 1.0 / math.sqrt(head_dim)
    nt_dims = (((1,), (1,)), ((), ()))  # contract last dims of both (no .T)
    heads = []
    for h in range(num_heads):  # static unroll; all slices are static
        sl = slice(h * head_dim, (h + 1) * head_dim)
        s = jax.lax.dot_general(q[:, sl], k[:, sl], nt_dims,
                                preferred_element_type=jnp.float32) * scale
        s = s - jnp.max(s, axis=-1, keepdims=True)
        p = jnp.exp(s)
        denom = jnp.sum(p, axis=-1, keepdims=True)
        if approx_recip:
            p = p * pl.reciprocal(denom, approx=True)
        else:
            p = p / denom
        heads.append(jnp.dot(p, v[:, sl], preferred_element_type=jnp.float32))
    return jnp.concatenate(heads, axis=1)


def _add_ln(x, y, g, b):
    """LayerNorm(x + y) over the last dim, eps = 1e-5 (PyTorch default)."""
    z = x + y
    mu = jnp.mean(z, axis=-1, keepdims=True)
    var = jnp.mean(jnp.square(z - mu), axis=-1, keepdims=True)
    return (z - mu) * jax.lax.rsqrt(var + 1e-5) * g + b


# ----------------------------------------------------------------------------
# Fully fused encoder kernel: n_cross cross_layers + connected_layer
# ----------------------------------------------------------------------------
def _encoder_kernel(img_ref, txt_ref, cross_w_ref, cross_v_ref,
                    conn_w_ref, conn_v_ref, img_out_ref, txt_out_ref, *,
                    num_heads, head_dim, n_cross, approx_recip):
    E = num_heads * head_dim
    img = img_ref[...]                   # (Limg, E)
    txt = txt_ref[...]                   # (S, E)
    img_rows = img_ref.shape[0]          # static

    # ---------------- cross_layers (static unroll over layers) --------------
    # Cross weight slab columns (units of E):
    #   sa_wqkv 0..3 | sa_wo 3..4 | ca_wq 4..5 | ca_wkv 5..7 | ca_wo 7..8 | ffn_w 8..9
    # Cross vector slab columns (units of E):
    #   sa_bqkv 0..3 | sa_bo 3..4 | ln1_g 4..5 | ln1_b 5..6 | ca_bq 6..7 |
    #   ca_bkv 7..9  | ca_bo 9..10 | ln2_g 10..11 | ln2_b 11..12 | ffn_b 12..13
    for l in range(n_cross):
        r0 = l * E

        def W(c0, c1, _r0=r0):
            return cross_w_ref[_r0:_r0 + E, c0 * E:c1 * E]

        def V(c0, c1, _l=l):
            return cross_v_ref[_l:_l + 1, c0 * E:c1 * E]

        # Self-attention on text: fused (E, 3E) QKV projection (one matmul).
        qkv = jnp.dot(txt, W(0, 3), preferred_element_type=jnp.float32) + V(0, 3)
        heads = _mha_core(qkv[:, :E], qkv[:, E:2 * E], qkv[:, 2 * E:],
                          num_heads, head_dim, approx_recip)
        sa = jnp.dot(heads, W(3, 4), preferred_element_type=jnp.float32) + V(3, 4)
        txt = _add_ln(txt, sa, V(4, 5), V(5, 6))

        # Cross-attention: query = text, key/value = image.
        if img_rows == 1:
            # Softmax over a single key is identically 1 -> attention output
            # is the projected V row broadcast over all queries.  Q / K
            # projections and the whole softmax are mathematically unused.
            v_img = jnp.dot(img, W(6, 7), preferred_element_type=jnp.float32) + V(8, 9)
            ca = jnp.dot(v_img, W(7, 8), preferred_element_type=jnp.float32) + V(9, 10)
        else:
            q = jnp.dot(txt, W(4, 5), preferred_element_type=jnp.float32) + V(6, 7)
            kv = jnp.dot(img, W(5, 7), preferred_element_type=jnp.float32) + V(7, 9)
            heads = _mha_core(q, kv[:, :E], kv[:, E:], num_heads, head_dim,
                              approx_recip)
            ca = jnp.dot(heads, W(7, 8), preferred_element_type=jnp.float32) + V(9, 10)
        txt = _add_ln(txt, ca, V(10, 11), V(11, 12))

        # FFN: plain Linear, no residual / norm after it (per the reference).
        txt = jnp.dot(txt, W(8, 9), preferred_element_type=jnp.float32) + V(12, 13)

    # ---------------- connected_layer ---------------------------------------
    # Conn weight slab columns (units of E): sa_wqkv 0..3 | sa_wo 3..4 | ffn_w 4..5
    # Conn vector slab columns (units of E):
    #   sa_bqkv 0..3 | sa_bo 3..4 | ln1_g 4..5 | ln1_b 5..6 | ffn_b 6..7 |
    #   ln2_g 7..8 | ln2_b 8..9
    def Wc(c0, c1):
        return conn_w_ref[:, c0 * E:c1 * E]

    def Vc(c0, c1):
        return conn_v_ref[:, c0 * E:c1 * E]

    cat = jnp.concatenate([img, txt], axis=0)        # torch.cat(dim=0), in-kernel
    qkv = jnp.dot(cat, Wc(0, 3), preferred_element_type=jnp.float32) + Vc(0, 3)
    heads = _mha_core(qkv[:, :E], qkv[:, E:2 * E], qkv[:, 2 * E:],
                      num_heads, head_dim, approx_recip)
    sa = jnp.dot(heads, Wc(3, 4), preferred_element_type=jnp.float32) + Vc(3, 4)
    cat = _add_ln(cat, sa, Vc(4, 5), Vc(5, 6))
    ffn = jnp.dot(cat, Wc(4, 5), preferred_element_type=jnp.float32) + Vc(6, 7)
    cat = _add_ln(cat, ffn, Vc(7, 8), Vc(8, 9))

    # image = cat[0].unsqueeze(0); text = cat[1:]  (split done in-kernel).
    img_out_ref[...] = cat[0:1, :].astype(img_out_ref.dtype)
    txt_out_ref[...] = cat[1:, :].astype(txt_out_ref.dtype)


# ----------------------------------------------------------------------------
# Python wrapper: a single pallas_call for the whole encoder forward
# ----------------------------------------------------------------------------
def encoder_layer_fwd(packed, image_features, text_features, num_heads,
                      approx_recip=True):
    limg, E = image_features.shape
    S, _ = text_features.shape
    head_dim = E // num_heads
    n_cross = packed["cross_w"].shape[0] // E   # static (derived from shape)

    kernel = functools.partial(_encoder_kernel, num_heads=num_heads,
                               head_dim=head_dim, n_cross=n_cross,
                               approx_recip=approx_recip)
    img_out, txt_out = pl.pallas_call(
        kernel,
        out_shape=(jax.ShapeDtypeStruct((1, E), image_features.dtype),
                   jax.ShapeDtypeStruct((limg + S - 1, E), text_features.dtype)),
        in_specs=[_VMEM] * 6,
        out_specs=(_VMEM, _VMEM),
    )(image_features, text_features,
      packed["cross_w"], packed["cross_v"], packed["conn_w"], packed["conn_v"])
    return img_out, txt_out


# ----------------------------------------------------------------------------
# Parameter init (deterministic, synthetic) + slab packing
# ----------------------------------------------------------------------------
def init_linear(key, fan_in, fan_out):
    k1, k2 = jax.random.split(key)
    return {"w": jax.random.normal(k1, (fan_in, fan_out), jnp.float32) / math.sqrt(fan_in),
            "b": jax.random.normal(k2, (1, fan_out), jnp.float32) * 0.01}


def init_ln(embed_dim):
    return {"g": jnp.ones((1, embed_dim), jnp.float32),
            "b": jnp.zeros((1, embed_dim), jnp.float32)}


def init_self_attn(key, embed_dim):
    ks = jax.random.split(key, 4)
    sc = 1.0 / math.sqrt(embed_dim)
    return {"wqkv": jax.random.normal(ks[0], (embed_dim, 3 * embed_dim), jnp.float32) * sc,
            "bqkv": jax.random.normal(ks[1], (1, 3 * embed_dim), jnp.float32) * 0.01,
            "wo": jax.random.normal(ks[2], (embed_dim, embed_dim), jnp.float32) * sc,
            "bo": jax.random.normal(ks[3], (1, embed_dim), jnp.float32) * 0.01}


def init_cross_attn(key, embed_dim):
    ks = jax.random.split(key, 6)
    sc = 1.0 / math.sqrt(embed_dim)
    return {"wq": jax.random.normal(ks[0], (embed_dim, embed_dim), jnp.float32) * sc,
            "bq": jax.random.normal(ks[1], (1, embed_dim), jnp.float32) * 0.01,
            "wkv": jax.random.normal(ks[2], (embed_dim, 2 * embed_dim), jnp.float32) * sc,
            "bkv": jax.random.normal(ks[3], (1, 2 * embed_dim), jnp.float32) * 0.01,
            "wo": jax.random.normal(ks[4], (embed_dim, embed_dim), jnp.float32) * sc,
            "bo": jax.random.normal(ks[5], (1, embed_dim), jnp.float32) * 0.01}


def init_cross_layer(key, embed_dim):
    k1, k2, k3 = jax.random.split(key, 3)
    return {"sa": init_self_attn(k1, embed_dim), "norm_1": init_ln(embed_dim),
            "ca": init_cross_attn(k2, embed_dim), "norm_2": init_ln(embed_dim),
            "ffn": init_linear(k3, embed_dim, embed_dim)}


def init_connected_layer(key, embed_dim):
    k1, k2 = jax.random.split(key, 2)
    return {"sa": init_self_attn(k1, embed_dim), "norm_1": init_ln(embed_dim),
            "ffn": init_linear(k2, embed_dim, embed_dim), "norm_2": init_ln(embed_dim)}


def init_encoder_layer(key, embed_dim, skip_layer_numbers):
    ks = jax.random.split(key, skip_layer_numbers + 2)
    return {
        # Defined in the PyTorch __init__ but never used in forward (kept for
        # structural fidelity with the reference module).
        "image_linaar": init_linear(ks[0], 1000, embed_dim),
        "cross_layers": [init_cross_layer(ks[1 + i], embed_dim)
                         for i in range(skip_layer_numbers)],
        "connected_layer": init_connected_layer(ks[-1], embed_dim),
    }


def pack_encoder_params(params, embed_dim):
    """Pack per-layer weights into a few lane-major slabs (done once, offline)."""
    cross_w_rows, cross_v_rows = [], []
    for cl in params["cross_layers"]:
        cross_w_rows.append(jnp.concatenate(
            [cl["sa"]["wqkv"], cl["sa"]["wo"], cl["ca"]["wq"], cl["ca"]["wkv"],
             cl["ca"]["wo"], cl["ffn"]["w"]], axis=1))               # (E, 9E)
        cross_v_rows.append(jnp.concatenate(
            [cl["sa"]["bqkv"], cl["sa"]["bo"], cl["norm_1"]["g"], cl["norm_1"]["b"],
             cl["ca"]["bq"], cl["ca"]["bkv"], cl["ca"]["bo"],
             cl["norm_2"]["g"], cl["norm_2"]["b"], cl["ffn"]["b"]], axis=1))  # (1, 13E)
    conn = params["connected_layer"]
    return {
        "cross_w": (jnp.concatenate(cross_w_rows, axis=0) if cross_w_rows
                    else jnp.zeros((0, 9 * embed_dim), jnp.float32)),
        "cross_v": (jnp.concatenate(cross_v_rows, axis=0) if cross_v_rows
                    else jnp.zeros((0, 13 * embed_dim), jnp.float32)),
        "conn_w": jnp.concatenate(
            [conn["sa"]["wqkv"], conn["sa"]["wo"], conn["ffn"]["w"]], axis=1),
        "conn_v": jnp.concatenate(
            [conn["sa"]["bqkv"], conn["sa"]["bo"], conn["norm_1"]["g"],
             conn["norm_1"]["b"], conn["ffn"]["b"], conn["norm_2"]["g"],
             conn["norm_2"]["b"]], axis=1),
    }


# ----------------------------------------------------------------------------
# Pure-JAX reference (mirrors the PyTorch forward, exact softmax) for checking
# ----------------------------------------------------------------------------
def _ref_mha(x_q, x_kv, wq, bq, wk, bk, wv, bv, wo, bo, num_heads):
    E = x_q.shape[1]
    D = E // num_heads
    q = x_q @ wq + bq
    k = x_kv @ wk + bk
    v = x_kv @ wv + bv
    outs = []
    for h in range(num_heads):
        sl = slice(h * D, (h + 1) * D)
        s = (q[:, sl] @ k[:, sl].T) / math.sqrt(D)
        p = jax.nn.softmax(s, axis=-1)
        outs.append(p @ v[:, sl])
    return jnp.concatenate(outs, axis=1) @ wo + bo


def _ref_ln(x, g, b):
    mu = jnp.mean(x, axis=-1, keepdims=True)
    var = jnp.mean(jnp.square(x - mu), axis=-1, keepdims=True)
    return (x - mu) * jax.lax.rsqrt(var + 1e-5) * g + b


def encoder_layer_ref(params, img, txt, num_heads):
    E = txt.shape[1]
    for cl in params["cross_layers"]:
        wqkv, bqkv = cl["sa"]["wqkv"], cl["sa"]["bqkv"]
        sa = _ref_mha(txt, txt, wqkv[:, :E], bqkv[:, :E], wqkv[:, E:2 * E],
                      bqkv[:, E:2 * E], wqkv[:, 2 * E:], bqkv[:, 2 * E:],
                      cl["sa"]["wo"], cl["sa"]["bo"], num_heads)
        txt = _ref_ln(txt + sa, cl["norm_1"]["g"], cl["norm_1"]["b"])
        wkv, bkv = cl["ca"]["wkv"], cl["ca"]["bkv"]
        ca = _ref_mha(txt, img, cl["ca"]["wq"], cl["ca"]["bq"], wkv[:, :E],
                      bkv[:, :E], wkv[:, E:], bkv[:, E:],
                      cl["ca"]["wo"], cl["ca"]["bo"], num_heads)
        txt = _ref_ln(txt + ca, cl["norm_2"]["g"], cl["norm_2"]["b"])
        txt = txt @ cl["ffn"]["w"] + cl["ffn"]["b"]
    conn = params["connected_layer"]
    cat = jnp.concatenate([img, txt], axis=0)
    wqkv, bqkv = conn["sa"]["wqkv"], conn["sa"]["bqkv"]
    sa = _ref_mha(cat, cat, wqkv[:, :E], bqkv[:, :E], wqkv[:, E:2 * E],
                  bqkv[:, E:2 * E], wqkv[:, 2 * E:], bqkv[:, 2 * E:],
                  conn["sa"]["wo"], conn["sa"]["bo"], num_heads)
    cat = _ref_ln(cat + sa, conn["norm_1"]["g"], conn["norm_1"]["b"])
    ffn = cat @ conn["ffn"]["w"] + conn["ffn"]["b"]
    cat = _ref_ln(cat + ffn, conn["norm_2"]["g"], conn["norm_2"]["b"])
    return cat[0:1, :], cat[1:, :]


# ----------------------------------------------------------------------------
if __name__ == "__main__":
    embed_dim = 32
    num_heads = 4
    skip_layer_numbers = 2
    seq = 8

    key = jax.random.PRNGKey(0)
    kp, kimg, ktxt = jax.random.split(key, 3)
    params = init_encoder_layer(kp, embed_dim, skip_layer_numbers)
    packed = pack_encoder_params(params, embed_dim)

    # Unbatched (L, E) tensors, as used by nn.MultiheadAttention in this module.
    image_features = jax.random.normal(kimg, (1, embed_dim), jnp.float32)
    text_features = jax.random.normal(ktxt, (seq, embed_dim), jnp.float32)

    fwd = jax.jit(functools.partial(encoder_layer_fwd, num_heads=num_heads))
    img_out, txt_out = fwd(packed, image_features, text_features)
    img_out, txt_out = jax.block_until_ready((img_out, txt_out))

    assert img_out.shape == (1, embed_dim) and img_out.dtype == jnp.float32
    assert txt_out.shape == (seq, embed_dim) and txt_out.dtype == jnp.float32
    assert bool(jnp.all(jnp.isfinite(img_out)))
    assert bool(jnp.all(jnp.isfinite(txt_out)))

    # Correctness check against the pure-JAX reference (relaxed tolerance for
    # the approx-reciprocal softmax path; set approx_recip=False for strict).
    img_ref, txt_ref = encoder_layer_ref(params, image_features, text_features,
                                         num_heads)
    assert bool(jnp.allclose(img_out, img_ref, atol=2e-2, rtol=2e-2))
    assert bool(jnp.allclose(txt_out, txt_ref, atol=2e-2, rtol=2e-2))

    print("KERNEL_OK")
</pallas_src>

<mosaic_0001>
module attributes {stable_mosaic.version = 11 : i64} {
  func.func @_encoder_kernel(%arg0: memref<1x32xf32, #tpu.memory_space<vmem>>, %arg1: memref<8x32xf32, #tpu.memory_space<vmem>>, %arg2: memref<64x288xf32, #tpu.memory_space<vmem>>, %arg3: memref<2x416xf32, #tpu.memory_space<vmem>>, %arg4: memref<32x160xf32, #tpu.memory_space<vmem>>, %arg5: memref<1x288xf32, #tpu.memory_space<vmem>>, %arg6: memref<1x32xf32, #tpu.memory_space<vmem>>, %arg7: memref<8x32xf32, #tpu.memory_space<vmem>>) attributes {dimension_semantics = [], scalar_prefetch = 0 : i64, scratch_operands = 0 : i64, tpu.core_type = #tpu.core_type<tc>} {
    %c0 = arith.constant 0 : index
    %c0_0 = arith.constant 0 : index
    %0 = vector.load %arg0[%c0, %c0_0] : memref<1x32xf32, #tpu.memory_space<vmem>>, vector<1x32xf32>
    %c0_1 = arith.constant 0 : index
    %c0_2 = arith.constant 0 : index
    %1 = vector.load %arg1[%c0_1, %c0_2] : memref<8x32xf32, #tpu.memory_space<vmem>>, vector<8x32xf32>
    %c0_3 = arith.constant 0 : index
    %c0_4 = arith.constant 0 : index
    %2 = vector.load %arg2[%c0_3, %c0_4] : memref<64x288xf32, #tpu.memory_space<vmem>>, vector<32x96xf32>
    %cst = arith.constant dense<0.000000e+00> : vector<8x96xf32>
    %3 = tpu.matmul %1, %2, %cst {dimension_numbers = #tpu.dot_dimension_numbers<[1], [0], [0], [1], [0, 0, 1, 1], [], []>} : vector<8x32xf32>, vector<32x96xf32>, vector<8x96xf32> -> vector<8x96xf32>
    %c0_5 = arith.constant 0 : index
    %c0_6 = arith.constant 0 : index
    %4 = vector.load %arg3[%c0_5, %c0_6] : memref<2x416xf32, #tpu.memory_space<vmem>>, vector<1x96xf32>
    %5 = vector.broadcast %4 : vector<1x96xf32> to vector<8x96xf32>
    %6 = arith.addf %3, %5 : vector<8x96xf32>
    %7 = vector.extract_strided_slice %6 {offsets = [0, 0], sizes = [8, 32], strides = [1, 1]} : vector<8x96xf32> to vector<8x32xf32>
    %8 = vector.extract_strided_slice %6 {offsets = [0, 32], sizes = [8, 32], strides = [1, 1]} : vector<8x96xf32> to vector<8x32xf32>
    %9 = vector.extract_strided_slice %6 {offsets = [0, 64], sizes = [8, 32], strides = [1, 1]} : vector<8x96xf32> to vector<8x32xf32>
    %10 = vector.extract_strided_slice %7 {offsets = [0, 0], sizes = [8, 8], strides = [1, 1]} : vector<8x32xf32> to vector<8x8xf32>
    %11 = vector.extract_strided_slice %8 {offsets = [0, 0], sizes = [8, 8], strides = [1, 1]} : vector<8x32xf32> to vector<8x8xf32>
    %cst_7 = arith.constant dense<0.000000e+00> : vector<8x8xf32>
    %12 = tpu.matmul %10, %11, %cst_7 {dimension_numbers = #tpu.dot_dimension_numbers<[1], [1], [0], [0], [0, 0, 1, 0], [], []>} : vector<8x8xf32>, vector<8x8xf32>, vector<8x8xf32> -> vector<8x8xf32>
    %cst_8 = arith.constant 0.353553385 : f32
    %13 = vector.broadcast %cst_8 : f32 to vector<8x8xf32>
    %14 = arith.mulf %12, %13 : vector<8x8xf32>
    %cst_9 = arith.constant dense<0xFF800000> : vector<8xf32>
    %15 = vector.multi_reduction <maximumf>, %14, %cst_9 [1] : vector<8x8xf32> to vector<8xf32>
    %16 = vector.shape_cast %15 : vector<8xf32> to vector<8x1xf32>
    %17 = vector.broadcast %16 : vector<8x1xf32> to vector<8x8xf32>
    %18 = arith.subf %14, %17 : vector<8x8xf32>
    %19 = math.exp %18 : vector<8x8xf32>
    %cst_10 = arith.constant dense<0.000000e+00> : vector<8xf32>
    %20 = vector.multi_reduction <add>, %19, %cst_10 [1] : vector<8x8xf32> to vector<8xf32>
    %21 = vector.shape_cast %20 : vector<8xf32> to vector<8x1xf32>
    %22 = tpu.reciprocal %21 {approx = true} : vector<8x1xf32> -> vector<8x1xf32>
    %23 = vector.broadcast %22 : vector<8x1xf32> to vector<8x8xf32>
    %24 = arith.mulf %19, %23 : vector<8x8xf32>
    %25 = vector.extract_strided_slice %9 {offsets = [0, 0], sizes = [8, 8], strides = [1, 1]} : vector<8x32xf32> to vector<8x8xf32>
    %cst_11 = arith.constant dense<0.000000e+00> : vector<8x8xf32>
    %26 = tpu.matmul %24, %25, %cst_11 {dimension_numbers = #tpu.dot_dimension_numbers<[1], [0], [0], [1], [0, 0, 1, 1], [], []>} : vector<8x8xf32>, vector<8x8xf32>, vector<8x8xf32> -> vector<8x8xf32>
    %27 = vector.extract_strided_slice %7 {offsets = [0, 8], sizes = [8, 8], strides = [1, 1]} : vector<8x32xf32> to vector<8x8xf32>
    %28 = vector.extract_strided_slice %8 {offsets = [0, 8], sizes = [8, 8], strides = [1, 1]} : vector<8x32xf32> to vector<8x8xf32>
    %cst_12 = arith.constant dense<0.000000e+00> : vector<8x8xf32>
    %29 = tpu.matmul %27, %28, %cst_12 {dimension_numbers = #tpu.dot_dimension_numbers<[1], [1], [0], [0], [0, 0, 1, 0], [], []>} : vector<8x8xf32>, vector<8x8xf32>, vector<8x8xf32> -> vector<8x8xf32>
    %cst_13 = arith.constant 0.353553385 : f32
    %30 = vector.broadcast %cst_13 : f32 to vector<8x8xf32>
    %31 = arith.mulf %29, %30 : vector<8x8xf32>
    %cst_14 = arith.constant dense<0xFF800000> : vector<8xf32>
    %32 = vector.multi_reduction <maximumf>, %31, %cst_14 [1] : vector<8x8xf32> to vector<8xf32>
    %33 = vector.shape_cast %32 : vector<8xf32> to vector<8x1xf32>
    %34 = vector.broadcast %33 : vector<8x1xf32> to vector<8x8xf32>
    %35 = arith.subf %31, %34 : vector<8x8xf32>
    %36 = math.exp %35 : vector<8x8xf32>
    %cst_15 = arith.constant dense<0.000000e+00> : vector<8xf32>
    %37 = vector.multi_reduction <add>, %36, %cst_15 [1] : vector<8x8xf32> to vector<8xf32>
    %38 = vector.shape_cast %37 : vector<8xf32> to vector<8x1xf32>
    %39 = tpu.reciprocal %38 {approx = true} : vector<8x1xf32> -> vector<8x1xf32>
    %40 = vector.broadcast %39 : vector<8x1xf32> to vector<8x8xf32>
    %41 = arith.mulf %36, %40 : vector<8x8xf32>
    %42 = vector.extract_strided_slice %9 {offsets = [0, 8], sizes = [8, 8], strides = [1, 1]} : vector<8x32xf32> to vector<8x8xf32>
    %cst_16 = arith.constant dense<0.000000e+00> : vector<8x8xf32>
    %43 = tpu.matmul %41, %42, %cst_16 {dimension_numbers = #tpu.dot_dimension_numbers<[1], [0], [0], [1], [0, 0, 1, 1], [], []>} : vector<8x8xf32>, vector<8x8xf32>, vector<8x8xf32> -> vector<8x8xf32>
    %44 = vector.extract_strided_slice %7 {offsets = [0, 16], sizes = [8, 8], strides = [1, 1]} : vector<8x32xf32> to vector<8x8xf32>
    %45 = vector.extract_strided_slice %8 {offsets = [0, 16], sizes = [8, 8], strides = [1, 1]} : vector<8x32xf32> to vector<8x8xf32>
    %cst_17 = arith.constant dense<0.000000e+00> : vector<8x8xf32>
    %46 = tpu.matmul %44, %45, %cst_17 {dimension_numbers = #tpu.dot_dimension_numbers<[1], [1], [0], [0], [0, 0, 1, 0], [], []>} : vector<8x8xf32>, vector<8x8xf32>, vector<8x8xf32> -> vector<8x8xf32>
    %cst_18 = arith.constant 0.353553385 : f32
    %47 = vector.broadcast %cst_18 : f32 to vector<8x8xf32>
    %48 = arith.mulf %46, %47 : vector<8x8xf32>
    %cst_19 = arith.constant dense<0xFF800000> : vector<8xf32>
    %49 = vector.multi_reduction <maximumf>, %48, %cst_19 [1] : vector<8x8xf32> to vector<8xf32>
    %50 = vector.shape_cast %49 : vector<8xf32> to vector<8x1xf32>
    %51 = vector.broadcast %50 : vector<8x1xf32> to vector<8x8xf32>
    %52 = arith.subf %48, %51 : vector<8x8xf32>
    %53 = math.exp %52 : vector<8x8xf32>
    %cst_20 = arith.constant dense<0.000000e+00> : vector<8xf32>
    %54 = vector.multi_reduction <add>, %53, %cst_20 [1] : vector<8x8xf32> to vector<8xf32>
    %55 = vector.shape_cast %54 : vector<8xf32> to vector<8x1xf32>
    %56 = tpu.reciprocal %55 {approx = true} : vector<8x1xf32> -> vector<8x1xf32>
    %57 = vector.broadcast %56 : vector<8x1xf32> to vector<8x8xf32>
    %58 = arith.mulf %53, %57 : vector<8x8xf32>
    %59 = vector.extract_strided_slice %9 {offsets = [0, 16], sizes = [8, 8], strides = [1, 1]} : vector<8x32xf32> to vector<8x8xf32>
    %cst_21 = arith.constant dense<0.000000e+00> : vector<8x8xf32>
    %60 = tpu.matmul %58, %59, %cst_21 {dimension_numbers = #tpu.dot_dimension_numbers<[1], [0], [0], [1], [0, 0, 1, 1], [], []>} : vector<8x8xf32>, vector<8x8xf32>, vector<8x8xf32> -> vector<8x8xf32>
    %61 = vector.extract_strided_slice %7 {offsets = [0, 24], sizes = [8, 8], strides = [1, 1]} : vector<8x32xf32> to vector<8x8xf32>
    %62 = vector.extract_strided_slice %8 {offsets = [0, 24], sizes = [8, 8], strides = [1, 1]} : vector<8x32xf32> to vector<8x8xf32>
    %cst_22 = arith.constant dense<0.000000e+00> : vector<8x8xf32>
    %63 = tpu.matmul %61, %62, %cst_22 {dimension_numbers = #tpu.dot_dimension_numbers<[1], [1], [0], [0], [0, 0, 1, 0], [], []>} : vector<8x8xf32>, vector<8x8xf32>, vector<8x8xf32> -> vector<8x8xf32>
    %cst_23 = arith.constant 0.353553385 : f32
    %64 = vector.broadcast %cst_23 : f32 to vector<8x8xf32>
    %65 = arith.mulf %63, %64 : vector<8x8xf32>
    %cst_24 = arith.constant dense<0xFF800000> : vector<8xf32>
    %66 = vector.multi_reduction <maximumf>, %65, %cst_24 [1] : vector<8x8xf32> to vector<8xf32>
    %67 = vector.shape_cast %66 : vector<8xf32> to vector<8x1xf32>
    %68 = vector.broadcast %67 : vector<8x1xf32> to vector<8x8xf32>
    %69 = arith.subf %65, %68 : vector<8x8xf32>
    %70 = math.exp %69 : vector<8x8xf32>
    %cst_25 = arith.constant dense<0.000000e+00> : vector<8xf32>
    %71 = vector.multi_reduction <add>, %70, %cst_25 [1] : vector<8x8xf32> to vector<8xf32>
    %72 = vector.shape_cast %71 : vector<8xf32> to vector<8x1xf32>
    %73 = tpu.reciprocal %72 {approx = true} : vector<8x1xf32> -> vector<8x1xf32>
    %74 = vector.broadcast %73 : vector<8x1xf32> to vector<8x8xf32>
    %75 = arith.mulf %70, %74 : vector<8x8xf32>
    %76 = vector.extract_strided_slice %9 {offsets = [0, 24], sizes = [8, 8], strides = [1, 1]} : vector<8x32xf32> to vector<8x8xf32>
    %cst_26 = arith.constant dense<0.000000e+00> : vector<8x8xf32>
    %77 = tpu.matmul %75, %76, %cst_26 {dimension_numbers = #tpu.dot_dimension_numbers<[1], [0], [0], [1], [0, 0, 1, 1], [], []>} : vector<8x8xf32>, vector<8x8xf32>, vector<8x8xf32> -> vector<8x8xf32>
    %78 = tpu.concatenate %26, %43, %60, %77 in 1 : vector<8x8xf32>, vector<8x8xf32>, vector<8x8xf32>, vector<8x8xf32> -> vector<8x32xf32>
    %c0_27 = arith.constant 0 : index
    %c96 = arith.constant 96 : index
    %79 = vector.load %arg2[%c0_27, %c96] : memref<64x288xf32, #tpu.memory_space<vmem>>, vector<32x32xf32>
    %cst_28 = arith.constant dense<0.000000e+00> : vector<8x32xf32>
    %80 = tpu.matmul %78, %79, %cst_28 {dimension_numbers = #tpu.dot_dimension_numbers<[1], [0], [0], [1], [0, 0, 1, 1], [], []>} : vector<8x32xf32>, vector<32x32xf32>, vector<8x32xf32> -> vector<8x32xf32>
    %c0_29 = arith.constant 0 : index
    %c96_30 = arith.constant 96 : index
    %81 = vector.load %arg3[%c0_29, %c96_30] : memref<2x416xf32, #tpu.memory_space<vmem>>, vector<1x32xf32>
    %82 = vector.broadcast %81 : vector<1x32xf32> to vector<8x32xf32>
    %83 = arith.addf %80, %82 : vector<8x32xf32>
    %c0_31 = arith.constant 0 : index
    %c128 = arith.constant 128 : index
    %84 = vector.load %arg3[%c0_31, %c128] : memref<2x416xf32, #tpu.memory_space<vmem>>, vector<1x32xf32>
    %c0_32 = arith.constant 0 : index
    %c160 = arith.constant 160 : index
    %85 = vector.load %arg3[%c0_32, %c160] : memref<2x416xf32, #tpu.memory_space<vmem>>, vector<1x32xf32>
    %86 = arith.addf %1, %83 : vector<8x32xf32>
    %cst_33 = arith.constant dense<0.000000e+00> : vector<8xf32>
    %87 = vector.multi_reduction <add>, %86, %cst_33 [1] : vector<8x32xf32> to vector<8xf32>
    %88 = vector.shape_cast %87 : vector<8xf32> to vector<8x1xf32>
    %cst_34 = arith.constant 3.200000e+01 : f32
    %89 = vector.broadcast %cst_34 : f32 to vector<8x1xf32>
    %90 = arith.divf %88, %89 : vector<8x1xf32>
    %91 = vector.broadcast %90 : vector<8x1xf32> to vector<8x32xf32>
    %92 = arith.subf %86, %91 : vector<8x32xf32>
    %93 = arith.mulf %92, %92 : vector<8x32xf32>
    %cst_35 = arith.constant dense<0.000000e+00> : vector<8xf32>
    %94 = vector.multi_reduction <add>, %93, %cst_35 [1] : vector<8x32xf32> to vector<8xf32>
    %95 = vector.shape_cast %94 : vector<8xf32> to vector<8x1xf32>
    %cst_36 = arith.constant 3.200000e+01 : f32
    %96 = vector.broadcast %cst_36 : f32 to vector<8x1xf32>
    %97 = arith.divf %95, %96 : vector<8x1xf32>
    %98 = vector.broadcast %90 : vector<8x1xf32> to vector<8x32xf32>
    %99 = arith.subf %86, %98 : vector<8x32xf32>
    %cst_37 = arith.constant 9.99999974E-6 : f32
    %100 = vector.broadcast %cst_37 : f32 to vector<8x1xf32>
    %101 = arith.addf %97, %100 : vector<8x1xf32>
    %102 = math.rsqrt %101 : vector<8x1xf32>
    %103 = vector.broadcast %102 : vector<8x1xf32> to vector<8x32xf32>
    %104 = arith.mulf %99, %103 : vector<8x32xf32>
    %105 = vector.broadcast %84 : vector<1x32xf32> to vector<8x32xf32>
    %106 = arith.mulf %104, %105 : vector<8x32xf32>
    %107 = vector.broadcast %85 : vector<1x32xf32> to vector<8x32xf32>
    %108 = arith.addf %106, %107 : vector<8x32xf32>
    %c0_38 = arith.constant 0 : index
    %c192 = arith.constant 192 : index
    %109 = vector.load %arg2[%c0_38, %c192] : memref<64x288xf32, #tpu.memory_space<vmem>>, vector<32x32xf32>
    %cst_39 = arith.constant dense<0.000000e+00> : vector<1x32xf32>
    %110 = tpu.matmul %0, %109, %cst_39 {dimension_numbers = #tpu.dot_dimension_numbers<[1], [0], [0], [1], [0, 0, 1, 1], [], []>} : vector<1x32xf32>, vector<32x32xf32>, vector<1x32xf32> -> vector<1x32xf32>
    %c0_40 = arith.constant 0 : index
    %c256 = arith.constant 256 : index
    %111 = vector.load %arg3[%c0_40, %c256] : memref<2x416xf32, #tpu.memory_space<vmem>>, vector<1x32xf32>
    %112 = arith.addf %110, %111 : vector<1x32xf32>
    %c0_41 = arith.constant 0 : index
    %c224 = arith.constant 224 : index
    %113 = vector.load %arg2[%c0_41, %c224] : memref<64x288xf32, #tpu.memory_space<vmem>>, vector<32x32xf32>
    %cst_42 = arith.constant dense<0.000000e+00> : vector<1x32xf32>
    %114 = tpu.matmul %112, %113, %cst_42 {dimension_numbers = #tpu.dot_dimension_numbers<[1], [0], [0], [1], [0, 0, 1, 1], [], []>} : vector<1x32xf32>, vector<32x32xf32>, vector<1x32xf32> -> vector<1x32xf32>
    %c0_43 = arith.constant 0 : index
    %c288 = arith.constant 288 : index
    %115 = vector.load %arg3[%c0_43, %c288] : memref<2x416xf32, #tpu.memory_space<vmem>>, vector<1x32xf32>
    %116 = arith.addf %114, %115 : vector<1x32xf32>
    %c0_44 = arith.constant 0 : index
    %c320 = arith.constant 320 : index
    %117 = vector.load %arg3[%c0_44, %c320] : memref<2x416xf32, #tpu.memory_space<vmem>>, vector<1x32xf32>
    %c0_45 = arith.constant 0 : index
    %c352 = arith.constant 352 : index
    %118 = vector.load %arg3[%c0_45, %c352] : memref<2x416xf32, #tpu.memory_space<vmem>>, vector<1x32xf32>
    %119 = vector.broadcast %116 : vector<1x32xf32> to vector<8x32xf32>
    %120 = arith.addf %108, %119 : vector<8x32xf32>
    %cst_46 = arith.constant dense<0.000000e+00> : vector<8xf32>
    %121 = vector.multi_reduction <add>, %120, %cst_46 [1] : vector<8x32xf32> to vector<8xf32>
    %122 = vector.shape_cast %121 : vector<8xf32> to vector<8x1xf32>
    %cst_47 = arith.constant 3.200000e+01 : f32
    %123 = vector.broadcast %cst_47 : f32 to vector<8x1xf32>
    %124 = arith.divf %122, %123 : vector<8x1xf32>
    %125 = vector.broadcast %124 : vector<8x1xf32> to vector<8x32xf32>
    %126 = arith.subf %120, %125 : vector<8x32xf32>
    %127 = arith.mulf %126, %126 : vector<8x32xf32>
    %cst_48 = arith.constant dense<0.000000e+00> : vector<8xf32>
    %128 = vector.multi_reduction <add>, %127, %cst_48 [1] : vector<8x32xf32> to vector<8xf32>
    %129 = vector.shape_cast %128 : vector<8xf32> to vector<8x1xf32>
    %cst_49 = arith.constant 3.200000e+01 : f32
    %130 = vector.broadcast %cst_49 : f32 to vector<8x1xf32>
    %131 = arith.divf %129, %130 : vector<8x1xf32>
    %132 = vector.broadcast %124 : vector<8x1xf32> to vector<8x32xf32>
    %133 = arith.subf %120, %132 : vector<8x32xf32>
    %cst_50 = arith.constant 9.99999974E-6 : f32
    %134 = vector.broadcast %cst_50 : f32 to vector<8x1xf32>
    %135 = arith.addf %131, %134 : vector<8x1xf32>
    %136 = math.rsqrt %135 : vector<8x1xf32>
    %137 = vector.broadcast %136 : vector<8x1xf32> to vector<8x32xf32>
    %138 = arith.mulf %133, %137 : vector<8x32xf32>
    %139 = vector.broadcast %117 : vector<1x32xf32> to vector<8x32xf32>
    %140 = arith.mulf %138, %139 : vector<8x32xf32>
    %141 = vector.broadcast %118 : vector<1x32xf32> to vector<8x32xf32>
    %142 = arith.addf %140, %141 : vector<8x32xf32>
    %c0_51 = arith.constant 0 : index
    %c256_52 = arith.constant 256 : index
    %143 = vector.load %arg2[%c0_51, %c256_52] : memref<64x288xf32, #tpu.memory_space<vmem>>, vector<32x32xf32>
    %cst_53 = arith.constant dense<0.000000e+00> : vector<8x32xf32>
    %144 = tpu.matmul %142, %143, %cst_53 {dimension_numbers = #tpu.dot_dimension_numbers<[1], [0], [0], [1], [0, 0, 1, 1], [], []>} : vector<8x32xf32>, vector<32x32xf32>, vector<8x32xf32> -> vector<8x32xf32>
    %c0_54 = arith.constant 0 : index
    %c384 = arith.constant 384 : index
    %145 = vector.load %arg3[%c0_54, %c384] : memref<2x416xf32, #tpu.memory_space<vmem>>, vector<1x32xf32>
    %146 = vector.broadcast %145 : vector<1x32xf32> to vector<8x32xf32>
    %147 = arith.addf %144, %146 : vector<8x32xf32>
    %c32 = arith.constant 32 : index
    %c0_55 = arith.constant 0 : index
    %148 = vector.load %arg2[%c32, %c0_55] : memref<64x288xf32, #tpu.memory_space<vmem>>, vector<32x96xf32>
    %cst_56 = arith.constant dense<0.000000e+00> : vector<8x96xf32>
    %149 = tpu.matmul %147, %148, %cst_56 {dimension_numbers = #tpu.dot_dimension_numbers<[1], [0], [0], [1], [0, 0, 1, 1], [], []>} : vector<8x32xf32>, vector<32x96xf32>, vector<8x96xf32> -> vector<8x96xf32>
    %c1 = arith.constant 1 : index
    %c0_57 = arith.constant 0 : index
    %150 = vector.load %arg3[%c1, %c0_57] : memref<2x416xf32, #tpu.memory_space<vmem>>, vector<1x96xf32>
    %151 = vector.broadcast %150 : vector<1x96xf32> to vector<8x96xf32>
    %152 = arith.addf %149, %151 : vector<8x96xf32>
    %153 = vector.extract_strided_slice %152 {offsets = [0, 0], sizes = [8, 32], strides = [1, 1]} : vector<8x96xf32> to vector<8x32xf32>
    %154 = vector.extract_strided_slice %152 {offsets = [0, 32], sizes = [8, 32], strides = [1, 1]} : vector<8x96xf32> to vector<8x32xf32>
    %155 = vector.extract_strided_slice %152 {offsets = [0, 64], sizes = [8, 32], strides = [1, 1]} : vector<8x96xf32> to vector<8x32xf32>
    %156 = vector.extract_strided_slice %153 {offsets = [0, 0], sizes = [8, 8], strides = [1, 1]} : vector<8x32xf32> to vector<8x8xf32>
    %157 = vector.extract_strided_slice %154 {offsets = [0, 0], sizes = [8, 8], strides = [1, 1]} : vector<8x32xf32> to vector<8x8xf32>
    %cst_58 = arith.constant dense<0.000000e+00> : vector<8x8xf32>
    %158 = tpu.matmul %156, %157, %cst_58 {dimension_numbers = #tpu.dot_dimension_numbers<[1], [1], [0], [0], [0, 0, 1, 0], [], []>} : vector<8x8xf32>, vector<8x8xf32>, vector<8x8xf32> -> vector<8x8xf32>
    %cst_59 = arith.constant 0.353553385 : f32
    %159 = vector.broadcast %cst_59 : f32 to vector<8x8xf32>
    %160 = arith.mulf %158, %159 : vector<8x8xf32>
    %cst_60 = arith.constant dense<0xFF800000> : vector<8xf32>
    %161 = vector.multi_reduction <maximumf>, %160, %cst_60 [1] : vector<8x8xf32> to vector<8xf32>
    %162 = vector.shape_cast %161 : vector<8xf32> to vector<8x1xf32>
    %163 = vector.broadcast %162 : vector<8x1xf32> to vector<8x8xf32>
    %164 = arith.subf %160, %163 : vector<8x8xf32>
    %165 = math.exp %164 : vector<8x8xf32>
    %cst_61 = arith.constant dense<0.000000e+00> : vector<8xf32>
    %166 = vector.multi_reduction <add>, %165, %cst_61 [1] : vector<8x8xf32> to vector<8xf32>
    %167 = vector.shape_cast %166 : vector<8xf32> to vector<8x1xf32>
    %168 = tpu.reciprocal %167 {approx = true} : vector<8x1xf32> -> vector<8x1xf32>
    %169 = vector.broadcast %168 : vector<8x1xf32> to vector<8x8xf32>
    %170 = arith.mulf %165, %169 : vector<8x8xf32>
    %171 = vector.extract_strided_slice %155 {offsets = [0, 0], sizes = [8, 8], strides = [1, 1]} : vector<8x32xf32> to vector<8x8xf32>
    %cst_62 = arith.constant dense<0.000000e+00> : vector<8x8xf32>
    %172 = tpu.matmul %170, %171, %cst_62 {dimension_numbers = #tpu.dot_dimension_numbers<[1], [0], [0], [1], [0, 0, 1, 1], [], []>} : vector<8x8xf32>, vector<8x8xf32>, vector<8x8xf32> -> vector<8x8xf32>
    %173 = vector.extract_strided_slice %153 {offsets = [0, 8], sizes = [8, 8], strides = [1, 1]} : vector<8x32xf32> to vector<8x8xf32>
    %174 = vector.extract_strided_slice %154 {offsets = [0, 8], sizes = [8, 8], strides = [1, 1]} : vector<8x32xf32> to vector<8x8xf32>
    %cst_63 = arith.constant dense<0.000000e+00> : vector<8x8xf32>
    %175 = tpu.matmul %173, %174, %cst_63 {dimension_numbers = #tpu.dot_dimension_numbers<[1], [1], [0], [0], [0, 0, 1, 0], [], []>} : vector<8x8xf32>, vector<8x8xf32>, vector<8x8xf32> -> vector<8x8xf32>
    %cst_64 = arith.constant 0.353553385 : f32
    %176 = vector.broadcast %cst_64 : f32 to vector<8x8xf32>
    %177 = arith.mulf %175, %176 : vector<8x8xf32>
    %cst_65 = arith.constant dense<0xFF800000> : vector<8xf32>
    %178 = vector.multi_reduction <maximumf>, %177, %cst_65 [1] : vector<8x8xf32> to vector<8xf32>
    %179 = vector.shape_cast %178 : vector<8xf32> to vector<8x1xf32>
    %180 = vector.broadcast %179 : vector<8x1xf32> to vector<8x8xf32>
    %181 = arith.subf %177, %180 : vector<8x8xf32>
    %182 = math.exp %181 : vector<8x8xf32>
    %cst_66 = arith.constant dense<0.000000e+00> : vector<8xf32>
    %183 = vector.multi_reduction <add>, %182, %cst_66 [1] : vector<8x8xf32> to vector<8xf32>
    %184 = vector.shape_cast %183 : vector<8xf32> to vector<8x1xf32>
    %185 = tpu.reciprocal %184 {approx = true} : vector<8x1xf32> -> vector<8x1xf32>
    %186 = vector.broadcast %185 : vector<8x1xf32> to vector<8x8xf32>
    %187 = arith.mulf %182, %186 : vector<8x8xf32>
    %188 = vector.extract_strided_slice %155 {offsets = [0, 8], sizes = [8, 8], strides = [1, 1]} : vector<8x32xf32> to vector<8x8xf32>
    %cst_67 = arith.constant dense<0.000000e+00> : vector<8x8xf32>
    %189 = tpu.matmul %187, %188, %cst_67 {dimension_numbers = #tpu.dot_dimension_numbers<[1], [0], [0], [1], [0, 0, 1, 1], [], []>} : vector<8x8xf32>, vector<8x8xf32>, vector<8x8xf32> -> vector<8x8xf32>
    %190 = vector.extract_strided_slice %153 {offsets = [0, 16], sizes = [8, 8], strides = [1, 1]} : vector<8x32xf32> to vector<8x8xf32>
    %191 = vector.extract_strided_slice %154 {offsets = [0, 16], sizes = [8, 8], strides = [1, 1]} : vector<8x32xf32> to vector<8x8xf32>
    %cst_68 = arith.constant dense<0.000000e+00> : vector<8x8xf32>
    %192 = tpu.matmul %190, %191, %cst_68 {dimension_numbers = #tpu.dot_dimension_numbers<[1], [1], [0], [0], [0, 0, 1, 0], [], []>} : vector<8x8xf32>, vector<8x8xf32>, vector<8x8xf32> -> vector<8x8xf32>
    %cst_69 = arith.constant 0.353553385 : f32
    %193 = vector.broadcast %cst_69 : f32 to vector<8x8xf32>
    %194 = arith.mulf %192, %193 : vector<8x8xf32>
    %cst_70 = arith.constant dense<0xFF800000> : vector<8xf32>
    %195 = vector.multi_reduction <maximumf>, %194, %cst_70 [1] : vector<8x8xf32> to vector<8xf32>
    %196 = vector.shape_cast %195 : vector<8xf32> to vector<8x1xf32>
    %197 = vector.broadcast %196 : vector<8x1xf32> to vector<8x8xf32>
    %198 = arith.subf %194, %197 : vector<8x8xf32>
    %199 = math.exp %198 : vector<8x8xf32>
    %cst_71 = arith.constant dense<0.000000e+00> : vector<8xf32>
    %200 = vector.multi_reduction <add>, %199, %cst_71 [1] : vector<8x8xf32> to vector<8xf32>
    %201 = vector.shape_cast %200 : vector<8xf32> to vector<8x1xf32>
    %202 = tpu.reciprocal %201 {approx = true} : vector<8x1xf32> -> vector<8x1xf32>
    %203 = vector.broadcast %202 : vector<8x1xf32> to vector<8x8xf32>
    %204 = arith.mulf %199, %203 : vector<8x8xf32>
    %205 = vector.extract_strided_slice %155 {offsets = [0, 16], sizes = [8, 8], strides = [1, 1]} : vector<8x32xf32> to vector<8x8xf32>
    %cst_72 = arith.constant dense<0.000000e+00> : vector<8x8xf32>
    %206 = tpu.matmul %204, %205, %cst_72 {dimension_numbers = #tpu.dot_dimension_numbers<[1], [0], [0], [1], [0, 0, 1, 1], [], []>} : vector<8x8xf32>, vector<8x8xf32>, vector<8x8xf32> -> vector<8x8xf32>
    %207 = vector.extract_strided_slice %153 {offsets = [0, 24], sizes = [8, 8], strides = [1, 1]} : vector<8x32xf32> to vector<8x8xf32>
    %208 = vector.extract_strided_slice %154 {offsets = [0, 24], sizes = [8, 8], strides = [1, 1]} : vector<8x32xf32> to vector<8x8xf32>
    %cst_73 = arith.constant dense<0.000000e+00> : vector<8x8xf32>
    %209 = tpu.matmul %207, %208, %cst_73 {dimension_numbers = #tpu.dot_dimension_numbers<[1], [1], [0], [0], [0, 0, 1, 0], [], []>} : vector<8x8xf32>, vector<8x8xf32>, vector<8x8xf32> -> vector<8x8xf32>
    %cst_74 = arith.constant 0.353553385 : f32
    %210 = vector.broadcast %cst_74 : f32 to vector<8x8xf32>
    %211 = arith.mulf %209, %210 : vector<8x8xf32>
    %cst_75 = arith.constant dense<0xFF800000> : vector<8xf32>
    %212 = vector.multi_reduction <maximumf>, %211, %cst_75 [1] : vector<8x8xf32> to vector<8xf32>
    %213 = vector.shape_cast %212 : vector<8xf32> to vector<8x1xf32>
    %214 = vector.broadcast %213 : vector<8x1xf32> to vector<8x8xf32>
    %215 = arith.subf %211, %214 : vector<8x8xf32>
    %216 = math.exp %215 : vector<8x8xf32>
    %cst_76 = arith.constant dense<0.000000e+00> : vector<8xf32>
    %217 = vector.multi_reduction <add>, %216, %cst_76 [1] : vector<8x8xf32> to vector<8xf32>
    %218 = vector.shape_cast %217 : vector<8xf32> to vector<8x1xf32>
    %219 = tpu.reciprocal %218 {approx = true} : vector<8x1xf32> -> vector<8x1xf32>
    %220 = vector.broadcast %219 : vector<8x1xf32> to vector<8x8xf32>
    %221 = arith.mulf %216, %220 : vector<8x8xf32>
    %222 = vector.extract_strided_slice %155 {offsets = [0, 24], sizes = [8, 8], strides = [1, 1]} : vector<8x32xf32> to vector<8x8xf32>
    %cst_77 = arith.constant dense<0.000000e+00> : vector<8x8xf32>
    %223 = tpu.matmul %221, %222, %cst_77 {dimension_numbers = #tpu.dot_dimension_numbers<[1], [0], [0], [1], [0, 0, 1, 1], [], []>} : vector<8x8xf32>, vector<8x8xf32>, vector<8x8xf32> -> vector<8x8xf32>
    %224 = tpu.concatenate %172, %189, %206, %223 in 1 : vector<8x8xf32>, vector<8x8xf32>, vector<8x8xf32>, vector<8x8xf32> -> vector<8x32xf32>
    %c32_78 = arith.constant 32 : index
    %c96_79 = arith.constant 96 : index
    %225 = vector.load %arg2[%c32_78, %c96_79] : memref<64x288xf32, #tpu.memory_space<vmem>>, vector<32x32xf32>
    %cst_80 = arith.constant dense<0.000000e+00> : vector<8x32xf32>
    %226 = tpu.matmul %224, %225, %cst_80 {dimension_numbers = #tpu.dot_dimension_numbers<[1], [0], [0], [1], [0, 0, 1, 1], [], []>} : vector<8x32xf32>, vector<32x32xf32>, vector<8x32xf32> -> vector<8x32xf32>
    %c1_81 = arith.constant 1 : index
    %c96_82 = arith.constant 96 : index
    %227 = vector.load %arg3[%c1_81, %c96_82] : memref<2x416xf32, #tpu.memory_space<vmem>>, vector<1x32xf32>
    %228 = vector.broadcast %227 : vector<1x32xf32> to vector<8x32xf32>
    %229 = arith.addf %226, %228 : vector<8x32xf32>
    %c1_83 = arith.constant 1 : index
    %c128_84 = arith.constant 128 : index
    %230 = vector.load %arg3[%c1_83, %c128_84] : memref<2x416xf32, #tpu.memory_space<vmem>>, vector<1x32xf32>
    %c1_85 = arith.constant 1 : index
    %c160_86 = arith.constant 160 : index
    %231 = vector.load %arg3[%c1_85, %c160_86] : memref<2x416xf32, #tpu.memory_space<vmem>>, vector<1x32xf32>
    %232 = arith.addf %147, %229 : vector<8x32xf32>
    %cst_87 = arith.constant dense<0.000000e+00> : vector<8xf32>
    %233 = vector.multi_reduction <add>, %232, %cst_87 [1] : vector<8x32xf32> to vector<8xf32>
    %234 = vector.shape_cast %233 : vector<8xf32> to vector<8x1xf32>
    %cst_88 = arith.constant 3.200000e+01 : f32
    %235 = vector.broadcast %cst_88 : f32 to vector<8x1xf32>
    %236 = arith.divf %234, %235 : vector<8x1xf32>
    %237 = vector.broadcast %236 : vector<8x1xf32> to vector<8x32xf32>
    %238 = arith.subf %232, %237 : vector<8x32xf32>
    %239 = arith.mulf %238, %238 : vector<8x32xf32>
    %cst_89 = arith.constant dense<0.000000e+00> : vector<8xf32>
    %240 = vector.multi_reduction <add>, %239, %cst_89 [1] : vector<8x32xf32> to vector<8xf32>
    %241 = vector.shape_cast %240 : vector<8xf32> to vector<8x1xf32>
    %cst_90 = arith.constant 3.200000e+01 : f32
    %242 = vector.broadcast %cst_90 : f32 to vector<8x1xf32>
    %243 = arith.divf %241, %242 : vector<8x1xf32>
    %244 = vector.broadcast %236 : vector<8x1xf32> to vector<8x32xf32>
    %245 = arith.subf %232, %244 : vector<8x32xf32>
    %cst_91 = arith.constant 9.99999974E-6 : f32
    %246 = vector.broadcast %cst_91 : f32 to vector<8x1xf32>
    %247 = arith.addf %243, %246 : vector<8x1xf32>
    %248 = math.rsqrt %247 : vector<8x1xf32>
    %249 = vector.broadcast %248 : vector<8x1xf32> to vector<8x32xf32>
    %250 = arith.mulf %245, %249 : vector<8x32xf32>
    %251 = vector.broadcast %230 : vector<1x32xf32> to vector<8x32xf32>
    %252 = arith.mulf %250, %251 : vector<8x32xf32>
    %253 = vector.broadcast %231 : vector<1x32xf32> to vector<8x32xf32>
    %254 = arith.addf %252, %253 : vector<8x32xf32>
    %c32_92 = arith.constant 32 : index
    %c192_93 = arith.constant 192 : index
    %255 = vector.load %arg2[%c32_92, %c192_93] : memref<64x288xf32, #tpu.memory_space<vmem>>, vector<32x32xf32>
    %cst_94 = arith.constant dense<0.000000e+00> : vector<1x32xf32>
    %256 = tpu.matmul %0, %255, %cst_94 {dimension_numbers = #tpu.dot_dimension_numbers<[1], [0], [0], [1], [0, 0, 1, 1], [], []>} : vector<1x32xf32>, vector<32x32xf32>, vector<1x32xf32> -> vector<1x32xf32>
    %c1_95 = arith.constant 1 : index
    %c256_96 = arith.constant 256 : index
    %257 = vector.load %arg3[%c1_95, %c256_96] : memref<2x416xf32, #tpu.memory_space<vmem>>, vector<1x32xf32>
    %258 = arith.addf %256, %257 : vector<1x32xf32>
    %c32_97 = arith.constant 32 : index
    %c224_98 = arith.constant 224 : index
    %259 = vector.load %arg2[%c32_97, %c224_98] : memref<64x288xf32, #tpu.memory_space<vmem>>, vector<32x32xf32>
    %cst_99 = arith.constant dense<0.000000e+00> : vector<1x32xf32>
    %260 = tpu.matmul %258, %259, %cst_99 {dimension_numbers = #tpu.dot_dimension_numbers<[1], [0], [0], [1], [0, 0, 1, 1], [], []>} : vector<1x32xf32>, vector<32x32xf32>, vector<1x32xf32> -> vector<1x32xf32>
    %c1_100 = arith.constant 1 : index
    %c288_101 = arith.constant 288 : index
    %261 = vector.load %arg3[%c1_100, %c288_101] : memref<2x416xf32, #tpu.memory_space<vmem>>, vector<1x32xf32>
    %262 = arith.addf %260, %261 : vector<1x32xf32>
    %c1_102 = arith.constant 1 : index
    %c320_103 = arith.constant 320 : index
    %263 = vector.load %arg3[%c1_102, %c320_103] : memref<2x416xf32, #tpu.memory_space<vmem>>, vector<1x32xf32>
    %c1_104 = arith.constant 1 : index
    %c352_105 = arith.constant 352 : index
    %264 = vector.load %arg3[%c1_104, %c352_105] : memref<2x416xf32, #tpu.memory_space<vmem>>, vector<1x32xf32>
    %265 = vector.broadcast %262 : vector<1x32xf32> to vector<8x32xf32>
    %266 = arith.addf %254, %265 : vector<8x32xf32>
    %cst_106 = arith.constant dense<0.000000e+00> : vector<8xf32>
    %267 = vector.multi_reduction <add>, %266, %cst_106 [1] : vector<8x32xf32> to vector<8xf32>
    %268 = vector.shape_cast %267 : vector<8xf32> to vector<8x1xf32>
    %cst_107 = arith.constant 3.200000e+01 : f32
    %269 = vector.broadcast %cst_107 : f32 to vector<8x1xf32>
    %270 = arith.divf %268, %269 : vector<8x1xf32>
    %271 = vector.broadcast %270 : vector<8x1xf32> to vector<8x32xf32>
    %272 = arith.subf %266, %271 : vector<8x32xf32>
    %273 = arith.mulf %272, %272 : vector<8x32xf32>
    %cst_108 = arith.constant dense<0.000000e+00> : vector<8xf32>
    %274 = vector.multi_reduction <add>, %273, %cst_108 [1] : vector<8x32xf32> to vector<8xf32>
    %275 = vector.shape_cast %274 : vector<8xf32> to vector<8x1xf32>
    %cst_109 = arith.constant 3.200000e+01 : f32
    %276 = vector.broadcast %cst_109 : f32 to vector<8x1xf32>
    %277 = arith.divf %275, %276 : vector<8x1xf32>
    %278 = vector.broadcast %270 : vector<8x1xf32> to vector<8x32xf32>
    %279 = arith.subf %266, %278 : vector<8x32xf32>
    %cst_110 = arith.constant 9.99999974E-6 : f32
    %280 = vector.broadcast %cst_110 : f32 to vector<8x1xf32>
    %281 = arith.addf %277, %280 : vector<8x1xf32>
    %282 = math.rsqrt %281 : vector<8x1xf32>
    %283 = vector.broadcast %282 : vector<8x1xf32> to vector<8x32xf32>
    %284 = arith.mulf %279, %283 : vector<8x32xf32>
    %285 = vector.broadcast %263 : vector<1x32xf32> to vector<8x32xf32>
    %286 = arith.mulf %284, %285 : vector<8x32xf32>
    %287 = vector.broadcast %264 : vector<1x32xf32> to vector<8x32xf32>
    %288 = arith.addf %286, %287 : vector<8x32xf32>
    %c32_111 = arith.constant 32 : index
    %c256_112 = arith.constant 256 : index
    %289 = vector.load %arg2[%c32_111, %c256_112] : memref<64x288xf32, #tpu.memory_space<vmem>>, vector<32x32xf32>
    %cst_113 = arith.constant dense<0.000000e+00> : vector<8x32xf32>
    %290 = tpu.matmul %288, %289, %cst_113 {dimension_numbers = #tpu.dot_dimension_numbers<[1], [0], [0], [1], [0, 0, 1, 1], [], []>} : vector<8x32xf32>, vector<32x32xf32>, vector<8x32xf32> -> vector<8x32xf32>
    %c1_114 = arith.constant 1 : index
    %c384_115 = arith.constant 384 : index
    %291 = vector.load %arg3[%c1_114, %c384_115] : memref<2x416xf32, #tpu.memory_space<vmem>>, vector<1x32xf32>
    %292 = vector.broadcast %291 : vector<1x32xf32> to vector<8x32xf32>
    %293 = arith.addf %290, %292 : vector<8x32xf32>
    %294 = tpu.concatenate %0, %293 in 0 : vector<1x32xf32>, vector<8x32xf32> -> vector<9x32xf32>
    %c0_116 = arith.constant 0 : index
    %c0_117 = arith.constant 0 : index
    %295 = vector.load %arg4[%c0_116, %c0_117] : memref<32x160xf32, #tpu.memory_space<vmem>>, vector<32x96xf32>
    %cst_118 = arith.constant dense<0.000000e+00> : vector<9x96xf32>
    %296 = tpu.matmul %294, %295, %cst_118 {dimension_numbers = #tpu.dot_dimension_numbers<[1], [0], [0], [1], [0, 0, 1, 1], [], []>} : vector<9x32xf32>, vector<32x96xf32>, vector<9x96xf32> -> vector<9x96xf32>
    %c0_119 = arith.constant 0 : index
    %c0_120 = arith.constant 0 : index
    %297 = vector.load %arg5[%c0_119, %c0_120] : memref<1x288xf32, #tpu.memory_space<vmem>>, vector<1x96xf32>
    %298 = vector.broadcast %297 : vector<1x96xf32> to vector<9x96xf32>
    %299 = arith.addf %296, %298 : vector<9x96xf32>
    %300 = vector.extract_strided_slice %299 {offsets = [0, 0], sizes = [9, 32], strides = [1, 1]} : vector<9x96xf32> to vector<9x32xf32>
    %301 = vector.extract_strided_slice %299 {offsets = [0, 32], sizes = [9, 32], strides = [1, 1]} : vector<9x96xf32> to vector<9x32xf32>
    %302 = vector.extract_strided_slice %299 {offsets = [0, 64], sizes = [9, 32], strides = [1, 1]} : vector<9x96xf32> to vector<9x32xf32>
    %303 = vector.extract_strided_slice %300 {offsets = [0, 0], sizes = [9, 8], strides = [1, 1]} : vector<9x32xf32> to vector<9x8xf32>
    %304 = vector.extract_strided_slice %301 {offsets = [0, 0], sizes = [9, 8], strides = [1, 1]} : vector<9x32xf32> to vector<9x8xf32>
    %cst_121 = arith.constant dense<0.000000e+00> : vector<9x9xf32>
    %305 = tpu.matmul %303, %304, %cst_121 {dimension_numbers = #tpu.dot_dimension_numbers<[1], [1], [0], [0], [0, 0, 1, 0], [], []>} : vector<9x8xf32>, vector<9x8xf32>, vector<9x9xf32> -> vector<9x9xf32>
    %cst_122 = arith.constant 0.353553385 : f32
    %306 = vector.broadcast %cst_122 : f32 to vector<9x9xf32>
    %307 = arith.mulf %305, %306 : vector<9x9xf32>
    %cst_123 = arith.constant dense<0xFF800000> : vector<9xf32>
    %308 = vector.multi_reduction <maximumf>, %307, %cst_123 [1] : vector<9x9xf32> to vector<9xf32>
    %309 = vector.shape_cast %308 : vector<9xf32> to vector<9x1xf32>
    %310 = vector.broadcast %309 : vector<9x1xf32> to vector<9x9xf32>
    %311 = arith.subf %307, %310 : vector<9x9xf32>
    %312 = math.exp %311 : vector<9x9xf32>
    %cst_124 = arith.constant dense<0.000000e+00> : vector<9xf32>
    %313 = vector.multi_reduction <add>, %312, %cst_124 [1] : vector<9x9xf32> to vector<9xf32>
    %314 = vector.shape_cast %313 : vector<9xf32> to vector<9x1xf32>
    %315 = tpu.reciprocal %314 {approx = true} : vector<9x1xf32> -> vector<9x1xf32>
    %316 = vector.broadcast %315 : vector<9x1xf32> to vector<9x9xf32>
    %317 = arith.mulf %312, %316 : vector<9x9xf32>
    %318 = vector.extract_strided_slice %302 {offsets = [0, 0], sizes = [9, 8], strides = [1, 1]} : vector<9x32xf32> to vector<9x8xf32>
    %cst_125 = arith.constant dense<0.000000e+00> : vector<9x8xf32>
    %319 = tpu.matmul %317, %318, %cst_125 {dimension_numbers = #tpu.dot_dimension_numbers<[1], [0], [0], [1], [0, 0, 1, 1], [], []>} : vector<9x9xf32>, vector<9x8xf32>, vector<9x8xf32> -> vector<9x8xf32>
    %320 = vector.extract_strided_slice %300 {offsets = [0, 8], sizes = [9, 8], strides = [1, 1]} : vector<9x32xf32> to vector<9x8xf32>
    %321 = vector.extract_strided_slice %301 {offsets = [0, 8], sizes = [9, 8], strides = [1, 1]} : vector<9x32xf32> to vector<9x8xf32>
    %cst_126 = arith.constant dense<0.000000e+00> : vector<9x9xf32>
    %322 = tpu.matmul %320, %321, %cst_126 {dimension_numbers = #tpu.dot_dimension_numbers<[1], [1], [0], [0], [0, 0, 1, 0], [], []>} : vector<9x8xf32>, vector<9x8xf32>, vector<9x9xf32> -> vector<9x9xf32>
    %cst_127 = arith.constant 0.353553385 : f32
    %323 = vector.broadcast %cst_127 : f32 to vector<9x9xf32>
    %324 = arith.mulf %322, %323 : vector<9x9xf32>
    %cst_128 = arith.constant dense<0xFF800000> : vector<9xf32>
    %325 = vector.multi_reduction <maximumf>, %324, %cst_128 [1] : vector<9x9xf32> to vector<9xf32>
    %326 = vector.shape_cast %325 : vector<9xf32> to vector<9x1xf32>
    %327 = vector.broadcast %326 : vector<9x1xf32> to vector<9x9xf32>
    %328 = arith.subf %324, %327 : vector<9x9xf32>
    %329 = math.exp %328 : vector<9x9xf32>
    %cst_129 = arith.constant dense<0.000000e+00> : vector<9xf32>
    %330 = vector.multi_reduction <add>, %329, %cst_129 [1] : vector<9x9xf32> to vector<9xf32>
    %331 = vector.shape_cast %330 : vector<9xf32> to vector<9x1xf32>
    %332 = tpu.reciprocal %331 {approx = true} : vector<9x1xf32> -> vector<9x1xf32>
    %333 = vector.broadcast %332 : vector<9x1xf32> to vector<9x9xf32>
    %334 = arith.mulf %329, %333 : vector<9x9xf32>
    %335 = vector.extract_strided_slice %302 {offsets = [0, 8], sizes = [9, 8], strides = [1, 1]} : vector<9x32xf32> to vector<9x8xf32>
    %cst_130 = arith.constant dense<0.000000e+00> : vector<9x8xf32>
    %336 = tpu.matmul %334, %335, %cst_130 {dimension_numbers = #tpu.dot_dimension_numbers<[1], [0], [0], [1], [0, 0, 1, 1], [], []>} : vector<9x9xf32>, vector<9x8xf32>, vector<9x8xf32> -> vector<9x8xf32>
    %337 = vector.extract_strided_slice %300 {offsets = [0, 16], sizes = [9, 8], strides = [1, 1]} : vector<9x32xf32> to vector<9x8xf32>
    %338 = vector.extract_strided_slice %301 {offsets = [0, 16], sizes = [9, 8], strides = [1, 1]} : vector<9x32xf32> to vector<9x8xf32>
    %cst_131 = arith.constant dense<0.000000e+00> : vector<9x9xf32>
    %339 = tpu.matmul %337, %338, %cst_131 {dimension_numbers = #tpu.dot_dimension_numbers<[1], [1], [0], [0], [0, 0, 1, 0], [], []>} : vector<9x8xf32>, vector<9x8xf32>, vector<9x9xf32> -> vector<9x9xf32>
    %cst_132 = arith.constant 0.353553385 : f32
    %340 = vector.broadcast %cst_132 : f32 to vector<9x9xf32>
    %341 = arith.mulf %339, %340 : vector<9x9xf32>
    %cst_133 = arith.constant dense<0xFF800000> : vector<9xf32>
    %342 = vector.multi_reduction <maximumf>, %341, %cst_133 [1] : vector<9x9xf32> to vector<9xf32>
    %343 = vector.shape_cast %342 : vector<9xf32> to vector<9x1xf32>
    %344 = vector.broadcast %343 : vector<9x1xf32> to vector<9x9xf32>
    %345 = arith.subf %341, %344 : vector<9x9xf32>
    %346 = math.exp %345 : vector<9x9xf32>
    %cst_134 = arith.constant dense<0.000000e+00> : vector<9xf32>
    %347 = vector.multi_reduction <add>, %346, %cst_134 [1] : vector<9x9xf32> to vector<9xf32>
    %348 = vector.shape_cast %347 : vector<9xf32> to vector<9x1xf32>
    %349 = tpu.reciprocal %348 {approx = true} : vector<9x1xf32> -> vector<9x1xf32>
    %350 = vector.broadcast %349 : vector<9x1xf32> to vector<9x9xf32>
    %351 = arith.mulf %346, %350 : vector<9x9xf32>
    %352 = vector.extract_strided_slice %302 {offsets = [0, 16], sizes = [9, 8], strides = [1, 1]} : vector<9x32xf32> to vector<9x8xf32>
    %cst_135 = arith.constant dense<0.000000e+00> : vector<9x8xf32>
    %353 = tpu.matmul %351, %352, %cst_135 {dimension_numbers = #tpu.dot_dimension_numbers<[1], [0], [0], [1], [0, 0, 1, 1], [], []>} : vector<9x9xf32>, vector<9x8xf32>, vector<9x8xf32> -> vector<9x8xf32>
    %354 = vector.extract_strided_slice %300 {offsets = [0, 24], sizes = [9, 8], strides = [1, 1]} : vector<9x32xf32> to vector<9x8xf32>
    %355 = vector.extract_strided_slice %301 {offsets = [0, 24], sizes = [9, 8], strides = [1, 1]} : vector<9x32xf32> to vector<9x8xf32>
    %cst_136 = arith.constant dense<0.000000e+00> : vector<9x9xf32>
    %356 = tpu.matmul %354, %355, %cst_136 {dimension_numbers = #tpu.dot_dimension_numbers<[1], [1], [0], [0], [0, 0, 1, 0], [], []>} : vector<9x8xf32>, vector<9x8xf32>, vector<9x9xf32> -> vector<9x9xf32>
    %cst_137 = arith.constant 0.353553385 : f32
    %357 = vector.broadcast %cst_137 : f32 to vector<9x9xf32>
    %358 = arith.mulf %356, %357 : vector<9x9xf32>
    %cst_138 = arith.constant dense<0xFF800000> : vector<9xf32>
    %359 = vector.multi_reduction <maximumf>, %358, %cst_138 [1] : vector<9x9xf32> to vector<9xf32>
    %360 = vector.shape_cast %359 : vector<9xf32> to vector<9x1xf32>
    %361 = vector.broadcast %360 : vector<9x1xf32> to vector<9x9xf32>
    %362 = arith.subf %358, %361 : vector<9x9xf32>
    %363 = math.exp %362 : vector<9x9xf32>
    %cst_139 = arith.constant dense<0.000000e+00> : vector<9xf32>
    %364 = vector.multi_reduction <add>, %363, %cst_139 [1] : vector<9x9xf32> to vector<9xf32>
    %365 = vector.shape_cast %364 : vector<9xf32> to vector<9x1xf32>
    %366 = tpu.reciprocal %365 {approx = true} : vector<9x1xf32> -> vector<9x1xf32>
    %367 = vector.broadcast %366 : vector<9x1xf32> to vector<9x9xf32>
    %368 = arith.mulf %363, %367 : vector<9x9xf32>
    %369 = vector.extract_strided_slice %302 {offsets = [0, 24], sizes = [9, 8], strides = [1, 1]} : vector<9x32xf32> to vector<9x8xf32>
    %cst_140 = arith.constant dense<0.000000e+00> : vector<9x8xf32>
    %370 = tpu.matmul %368, %369, %cst_140 {dimension_numbers = #tpu.dot_dimension_numbers<[1], [0], [0], [1], [0, 0, 1, 1], [], []>} : vector<9x9xf32>, vector<9x8xf32>, vector<9x8xf32> -> vector<9x8xf32>
    %371 = tpu.concatenate %319, %336, %353, %370 in 1 : vector<9x8xf32>, vector<9x8xf32>, vector<9x8xf32>, vector<9x8xf32> -> vector<9x32xf32>
    %c0_141 = arith.constant 0 : index
    %c96_142 = arith.constant 96 : index
    %372 = vector.load %arg4[%c0_141, %c96_142] : memref<32x160xf32, #tpu.memory_space<vmem>>, vector<32x32xf32>
    %cst_143 = arith.constant dense<0.000000e+00> : vector<9x32xf32>
    %373 = tpu.matmul %371, %372, %cst_143 {dimension_numbers = #tpu.dot_dimension_numbers<[1], [0], [0], [1], [0, 0, 1, 1], [], []>} : vector<9x32xf32>, vector<32x32xf32>, vector<9x32xf32> -> vector<9x32xf32>
    %c0_144 = arith.constant 0 : index
    %c96_145 = arith.constant 96 : index
    %374 = vector.load %arg5[%c0_144, %c96_145] : memref<1x288xf32, #tpu.memory_space<vmem>>, vector<1x32xf32>
    %375 = vector.broadcast %374 : vector<1x32xf32> to vector<9x32xf32>
    %376 = arith.addf %373, %375 : vector<9x32xf32>
    %c0_146 = arith.constant 0 : index
    %c128_147 = arith.constant 128 : index
    %377 = vector.load %arg5[%c0_146, %c128_147] : memref<1x288xf32, #tpu.memory_space<vmem>>, vector<1x32xf32>
    %c0_148 = arith.constant 0 : index
    %c160_149 = arith.constant 160 : index
    %378 = vector.load %arg5[%c0_148, %c160_149] : memref<1x288xf32, #tpu.memory_space<vmem>>, vector<1x32xf32>
    %379 = arith.addf %294, %376 : vector<9x32xf32>
    %cst_150 = arith.constant dense<0.000000e+00> : vector<9xf32>
    %380 = vector.multi_reduction <add>, %379, %cst_150 [1] : vector<9x32xf32> to vector<9xf32>
    %381 = vector.shape_cast %380 : vector<9xf32> to vector<9x1xf32>
    %cst_151 = arith.constant 3.200000e+01 : f32
    %382 = vector.broadcast %cst_151 : f32 to vector<9x1xf32>
    %383 = arith.divf %381, %382 : vector<9x1xf32>
    %384 = vector.broadcast %383 : vector<9x1xf32> to vector<9x32xf32>
    %385 = arith.subf %379, %384 : vector<9x32xf32>
    %386 = arith.mulf %385, %385 : vector<9x32xf32>
    %cst_152 = arith.constant dense<0.000000e+00> : vector<9xf32>
    %387 = vector.multi_reduction <add>, %386, %cst_152 [1] : vector<9x32xf32> to vector<9xf32>
    %388 = vector.shape_cast %387 : vector<9xf32> to vector<9x1xf32>
    %cst_153 = arith.constant 3.200000e+01 : f32
    %389 = vector.broadcast %cst_153 : f32 to vector<9x1xf32>
    %390 = arith.divf %388, %389 : vector<9x1xf32>
    %391 = vector.broadcast %383 : vector<9x1xf32> to vector<9x32xf32>
    %392 = arith.subf %379, %391 : vector<9x32xf32>
    %cst_154 = arith.constant 9.99999974E-6 : f32
    %393 = vector.broadcast %cst_154 : f32 to vector<9x1xf32>
    %394 = arith.addf %390, %393 : vector<9x1xf32>
    %395 = math.rsqrt %394 : vector<9x1xf32>
    %396 = vector.broadcast %395 : vector<9x1xf32> to vector<9x32xf32>
    %397 = arith.mulf %392, %396 : vector<9x32xf32>
    %398 = vector.broadcast %377 : vector<1x32xf32> to vector<9x32xf32>
    %399 = arith.mulf %397, %398 : vector<9x32xf32>
    %400 = vector.broadcast %378 : vector<1x32xf32> to vector<9x32xf32>
    %401 = arith.addf %399, %400 : vector<9x32xf32>
    %c0_155 = arith.constant 0 : index
    %c128_156 = arith.constant 128 : index
    %402 = vector.load %arg4[%c0_155, %c128_156] : memref<32x160xf32, #tpu.memory_space<vmem>>, vector<32x32xf32>
    %cst_157 = arith.constant dense<0.000000e+00> : vector<9x32xf32>
    %403 = tpu.matmul %401, %402, %cst_157 {dimension_numbers = #tpu.dot_dimension_numbers<[1], [0], [0], [1], [0, 0, 1, 1], [], []>} : vector<9x32xf32>, vector<32x32xf32>, vector<9x32xf32> -> vector<9x32xf32>
    %c0_158 = arith.constant 0 : index
    %c192_159 = arith.constant 192 : index
    %404 = vector.load %arg5[%c0_158, %c192_159] : memref<1x288xf32, #tpu.memory_space<vmem>>, vector<1x32xf32>
    %405 = vector.broadcast %404 : vector<1x32xf32> to vector<9x32xf32>
    %406 = arith.addf %403, %405 : vector<9x32xf32>
    %c0_160 = arith.constant 0 : index
    %c224_161 = arith.constant 224 : index
    %407 = vector.load %arg5[%c0_160, %c224_161] : memref<1x288xf32, #tpu.memory_space<vmem>>, vector<1x32xf32>
    %c0_162 = arith.constant 0 : index
    %c256_163 = arith.constant 256 : index
    %408 = vector.load %arg5[%c0_162, %c256_163] : memref<1x288xf32, #tpu.memory_space<vmem>>, vector<1x32xf32>
    %409 = arith.addf %401, %406 : vector<9x32xf32>
    %cst_164 = arith.constant dense<0.000000e+00> : vector<9xf32>
    %410 = vector.multi_reduction <add>, %409, %cst_164 [1] : vector<9x32xf32> to vector<9xf32>
    %411 = vector.shape_cast %410 : vector<9xf32> to vector<9x1xf32>
    %cst_165 = arith.constant 3.200000e+01 : f32
    %412 = vector.broadcast %cst_165 : f32 to vector<9x1xf32>
    %413 = arith.divf %411, %412 : vector<9x1xf32>
    %414 = vector.broadcast %413 : vector<9x1xf32> to vector<9x32xf32>
    %415 = arith.subf %409, %414 : vector<9x32xf32>
    %416 = arith.mulf %415, %415 : vector<9x32xf32>
    %cst_166 = arith.constant dense<0.000000e+00> : vector<9xf32>
    %417 = vector.multi_reduction <add>, %416, %cst_166 [1] : vector<9x32xf32> to vector<9xf32>
    %418 = vector.shape_cast %417 : vector<9xf32> to vector<9x1xf32>
    %cst_167 = arith.constant 3.200000e+01 : f32
    %419 = vector.broadcast %cst_167 : f32 to vector<9x1xf32>
    %420 = arith.divf %418, %419 : vector<9x1xf32>
    %421 = vector.broadcast %413 : vector<9x1xf32> to vector<9x32xf32>
    %422 = arith.subf %409, %421 : vector<9x32xf32>
    %cst_168 = arith.constant 9.99999974E-6 : f32
    %423 = vector.broadcast %cst_168 : f32 to vector<9x1xf32>
    %424 = arith.addf %420, %423 : vector<9x1xf32>
    %425 = math.rsqrt %424 : vector<9x1xf32>
    %426 = vector.broadcast %425 : vector<9x1xf32> to vector<9x32xf32>
    %427 = arith.mulf %422, %426 : vector<9x32xf32>
    %428 = vector.broadcast %407 : vector<1x32xf32> to vector<9x32xf32>
    %429 = arith.mulf %427, %428 : vector<9x32xf32>
    %430 = vector.broadcast %408 : vector<1x32xf32> to vector<9x32xf32>
    %431 = arith.addf %429, %430 : vector<9x32xf32>
    %432 = vector.extract_strided_slice %431 {offsets = [0, 0], sizes = [1, 32], strides = [1, 1]} : vector<9x32xf32> to vector<1x32xf32>
    %c0_169 = arith.constant 0 : index
    %c0_170 = arith.constant 0 : index
    %433 = vector.load %arg6[%c0_169, %c0_170] : memref<1x32xf32, #tpu.memory_space<vmem>>, vector<1x32xf32>
    tpu.vector_store %arg6[%c0_169, %c0_170], %432 {strides = array<i32>} : memref<1x32xf32, #tpu.memory_space<vmem>>, vector<1x32xf32>,
    %434 = vector.extract_strided_slice %431 {offsets = [1, 0], sizes = [8, 32], strides = [1, 1]} : vector<9x32xf32> to vector<8x32xf32>
    %c0_171 = arith.constant 0 : index
    %c0_172 = arith.constant 0 : index
    %435 = vector.load %arg7[%c0_171, %c0_172] : memref<8x32xf32, #tpu.memory_space<vmem>>, vector<8x32xf32>
    tpu.vector_store %arg7[%c0_171, %c0_172], %434 {strides = array<i32>} : memref<8x32xf32, #tpu.memory_space<vmem>>, vector<8x32xf32>,
    return
  }
}

</mosaic_0001>

<llo_original>
// kernel: encoder_layer_fwd.1
$region0: #{encoder_layer_fwd.1}
  #allocation0 [shape = 'u32[]', space=smem, size = 0x4, offset = 0x4, fixed_abs, tag = 'smem constant byte address 0x4 - core index']
  #allocation1 [shape = 'u32[72,128]{1,0:T(1,128)}', space=vmem, size = 0x9000, scoped, tag = 'internal scratch']
  %s0 = inlined_call_operand.vmem [shape: f32[1,32], index: 0, kind: input, shape index: {}]
  %s1 = inlined_call_operand.hbm [shape: f32[8,32], index: 1, kind: input, shape index: {}]
  %s2 = inlined_call_operand.hbm [shape: f32[64,288], index: 2, kind: input, shape index: {}]
  %s3 = inlined_call_operand.hbm [shape: f32[2,416], index: 3, kind: input, shape index: {}]
  %s4 = inlined_call_operand.hbm [shape: f32[32,160], index: 4, kind: input, shape index: {}]
  %s5 = inlined_call_operand.hbm [shape: f32[1,288], index: 5, kind: input, shape index: {}]
  %s6 = inlined_call_operand.hbm [shape: f32[1,32], index: 6, kind: output, shape index: {0}]
  %s7 = inlined_call_operand.hbm [shape: f32[8,32], index: 7, kind: output, shape index: {1}]
  %8 = xla_tuple %s6, %s7
  %s9 = sld [smem:[#allocation0]]
  $region62: #{encoder_layer_fwd.1} parent=0
    _
  %s11 = ssub.s32 1, %s9
  %s12 = scalar_select 0, %s11, %s9
  $region1: #{encoder_layer_fwd.1} parent=0
    #allocation2 [shape = 'u8[4096]{0}', space=vmem, size = 0x1000, scoped, tag = 'input window, operand 1, single buffered']
    #allocation3 [shape = 's32[1]{0}', space=sflag, size = 0x4, scoped, tag = 'scoped memory for encoder_layer_fwd.1']
    #allocation4 [shape = 's32[1]{0}', space=sflag, size = 0x4, scoped, tag = 'scoped memory for encoder_layer_fwd.1']
    #allocation5 [shape = 'u8[98304]{0}', space=vmem, size = 0x18000, scoped, tag = 'input window, operand 2, single buffered']
    #allocation6 [shape = 's32[1]{0}', space=sflag, size = 0x4, scoped, tag = 'scoped memory for encoder_layer_fwd.1']
    #allocation7 [shape = 'u8[4096]{0}', space=vmem, size = 0x1000, scoped, tag = 'input window, operand 3, single buffered']
    #allocation8 [shape = 'u8[32768]{0}', space=vmem, size = 0x8000, scoped, tag = 'input window, operand 4, single buffered']
    #allocation9 [shape = 's32[1]{0}', space=sflag, size = 0x4, scoped, tag = 'scoped memory for encoder_layer_fwd.1']
    #allocation10 [shape = 'u8[1536]{0}', space=vmem, size = 0x800, scoped, tag = 'input window, operand 5, single buffered']
    #allocation11 [shape = 'u8[512]{0}', space=vmem, size = 0x400, scoped, tag = 'output window, operand 0, single buffered']
    #allocation12 [shape = 'u8[4096]{0}', space=vmem, size = 0x1000, scoped, tag = 'output window, operand 1, single buffered']
    #allocation13 [shape = 's32[1]{0}', space=sflag, size = 0x4, scoped, tag = 'scoped memory for encoder_layer_fwd.1']
    %13 = vsyncpa [#allocation3], 0
    %14 = vsyncpa [#allocation6], 0
    %15 = vsyncpa [#allocation9], 0
    %16 = vsyncpa [#allocation4], 0
    %17 = vsyncpa [#allocation13], 0
    // Predicated region
    $region2: #{encoder_layer_fwd.1} parent=1 // pred_check
      _
    $region3: #{encoder_layer_fwd.1} parent=1 // pred_check_branch
      %19 = sbr.rel (0) target = $region5
    $region4: #{encoder_layer_fwd.1} parent=1 // pred_region
      _
    $region5: #{encoder_layer_fwd.1} parent=1 // pred_fallthru
      _
    // Predicated region
    $region6: #{encoder_layer_fwd.1} parent=1 // pred_check
      _
    $region7: #{encoder_layer_fwd.1} parent=1 // pred_check_branch
      %21 = sbr.rel (0) target = $region9
    $region8: #{encoder_layer_fwd.1} parent=1 // pred_region
      %23 = vsyncadd [#allocation3], 0
      %s25 = sshll.u32 %s1, 4
      %s26 = int_to_ptr.hbm [resolvable:$true] %s25
      %s27 = sshll.u32 [#allocation2], 4
      %s28 = int_to_ptr.vmem [resolvable:$true] %s27
      %30 = dma.hbm_to_vmem [thread:$0]  %s26, 128, %s28, [#allocation3]
    $region9: #{encoder_layer_fwd.1} parent=1 // pred_fallthru
      _
    // Predicated region
    $region10: #{encoder_layer_fwd.1} parent=1 // pred_check
      _
    $region11: #{encoder_layer_fwd.1} parent=1 // pred_check_branch
      %32 = sbr.rel (0) target = $region13
    $region12: #{encoder_layer_fwd.1} parent=1 // pred_region
      %34 = vsyncadd [#allocation6], 0
      %s35 = sshll.u32 %s2, 4
      %s36 = int_to_ptr.hbm [resolvable:$true] %s35
      %s37 = sshll.u32 [#allocation5], 4
      %s38 = int_to_ptr.vmem [resolvable:$true] %s37
      %43 = dma.hbm_to_vmem [thread:$0]  %s36, 3072, %s38, [#allocation6], 384, 384, 24
    $region13: #{encoder_layer_fwd.1} parent=1 // pred_fallthru
      _
    // Predicated region
    $region14: #{encoder_layer_fwd.1} parent=1 // pred_check
      _
    $region15: #{encoder_layer_fwd.1} parent=1 // pred_check_branch
      %45 = sbr.rel (0) target = $region17
    $region16: #{encoder_layer_fwd.1} parent=1 // pred_region
      %47 = vsyncadd [#allocation6], 0
      %s49 = sshll.u32 %s3, 4
      %s50 = int_to_ptr.hbm [resolvable:$true] %s49
      %s51 = sshll.u32 [#allocation7], 4
      %s52 = int_to_ptr.vmem [resolvable:$true] %s51
      %54 = dma.hbm_to_vmem [thread:$0]  %s50, 128, %s52, [#allocation6]
    $region17: #{encoder_layer_fwd.1} parent=1 // pred_fallthru
      _
    // Predicated region
    $region18: #{encoder_layer_fwd.1} parent=1 // pred_check
      _
    $region19: #{encoder_layer_fwd.1} parent=1 // pred_check_branch
      %56 = sbr.rel (0) target = $region21
    $region20: #{encoder_layer_fwd.1} parent=1 // pred_region
      %58 = vsyncadd [#allocation9], 0
      %s59 = sshll.u32 %s4, 4
      %s60 = int_to_ptr.hbm [resolvable:$true] %s59
      %s61 = sshll.u32 [#allocation8], 4
      %s62 = int_to_ptr.vmem [resolvable:$true] %s61
      %67 = dma.hbm_to_vmem [thread:$0]  %s60, 1024, %s62, [#allocation9], 256, 256, 16
    $region21: #{encoder_layer_fwd.1} parent=1 // pred_fallthru
      _
    // Predicated region
    $region22: #{encoder_layer_fwd.1} parent=1 // pred_check
      _
    $region23: #{encoder_layer_fwd.1} parent=1 // pred_check_branch
      %69 = sbr.rel (0) target = $region25
    $region24: #{encoder_layer_fwd.1} parent=1 // pred_region
      %71 = vsyncadd [#allocation9], 0
      %s73 = sshll.u32 %s5, 4
      %s74 = int_to_ptr.hbm [resolvable:$true] %s73
      %s75 = sshll.u32 [#allocation10], 4
      %s76 = int_to_ptr.vmem [resolvable:$true] %s75
      %78 = dma.hbm_to_vmem [thread:$0]  %s74, 48, %s76, [#allocation9]
    $region25: #{encoder_layer_fwd.1} parent=1 // pred_fallthru
      _
    // Predicated region
    $region26: #{encoder_layer_fwd.1} parent=1 // pred_check
      _
    $region27: #{encoder_layer_fwd.1} parent=1 // pred_check_branch
      %80 = sbr.rel (0) target = $region29
    $region28: #{encoder_layer_fwd.1} parent=1 // pred_region
      %82 = dma.done [#allocation3], 128
    $region29: #{encoder_layer_fwd.1} parent=1 // pred_fallthru
      _
    // Predicated region
    $region30: #{encoder_layer_fwd.1} parent=1 // pred_check
      _
    $region31: #{encoder_layer_fwd.1} parent=1 // pred_check_branch
      %84 = sbr.rel (0) target = $region33
    $region32: #{encoder_layer_fwd.1} parent=1 // pred_region
      %86 = dma.done [#allocation6], 3072
    $region33: #{encoder_layer_fwd.1} parent=1 // pred_fallthru
      _
    // Predicated region
    $region34: #{encoder_layer_fwd.1} parent=1 // pred_check
      _
    $region35: #{encoder_layer_fwd.1} parent=1 // pred_check_branch
      %88 = sbr.rel (0) target = $region37
    $region36: #{encoder_layer_fwd.1} parent=1 // pred_region
      %90 = dma.done [#allocation6], 128
    $region37: #{encoder_layer_fwd.1} parent=1 // pred_fallthru
      _
    // Predicated region
    $region38: #{encoder_layer_fwd.1} parent=1 // pred_check
      _
    $region39: #{encoder_layer_fwd.1} parent=1 // pred_check_branch
      %92 = sbr.rel (0) target = $region41
    $region40: #{encoder_layer_fwd.1} parent=1 // pred_region
      %94 = dma.done [#allocation9], 1024
    $region41: #{encoder_layer_fwd.1} parent=1 // pred_fallthru
      _
    // Predicated region
    $region42: #{encoder_layer_fwd.1} parent=1 // pred_check
      _
    $region43: #{encoder_layer_fwd.1} parent=1 // pred_check_branch
      %96 = sbr.rel (0) target = $region45
    $region44: #{encoder_layer_fwd.1} parent=1 // pred_region
      %98 = dma.done [#allocation9], 48
    $region45: #{encoder_layer_fwd.1} parent=1 // pred_fallthru
      _
    %v99 = vld [vmem:[%s0] sm:$0x1]
    %v100 = vld [vmem:[#allocation2] sm:$0xff]
    %v101 = vld [vmem:[#allocation5] sm:$0xff]
    %v102 = vld [vmem:[#allocation5 + $0x18] sm:$0xff]
    %v103 = vld [vmem:[#allocation5 + $0x30] sm:$0xff]
    %v104 = vld [vmem:[#allocation5 + $0x48] sm:$0xff]
    %v105 = vld [vmem:[#allocation7] sm:$0x1]
    %v106 = vperm.slane %v105, 0
    %vm107 = vcmask 261120
    %v109 = vsel %vm107, %v100, 0
    %111 = vmatpush.msra.mxu0 0.0
    %112 = vmatpush.msra.mxu0 0.0
    %113 = vmatpush.msra.mxu0 0.0
    %114 = vmatpush.msra.mxu0 0.0
    %115 = vmatpush.msra.mxu0 0.0
    %116 = vmatpush.msra.mxu0 0.0
    %117 = vmatpush.msra.mxu0 0.0
    %118 = vmatpush.msra.mxu0 0.0
    %119 = vmatpush.msra.mxu0 0.0
    %120 = vmatpush.msra.mxu0 0.0
    %121 = vmatpush.msra.mxu0 0.0
    %122 = vmatpush.msra.mxu0 0.0
    %123 = vmatpush.msra.mxu0 %v104
    %124 = vmatpush.msra.mxu0 %v103
    %125 = vmatpush.msra.mxu0 %v102
    %126 = vmatpush.msra.mxu0 %v101
    %127 = vmatmul.f32.gmra.mxu0 %v109
    %v128 = vpop.f32.mrf.mxu0
    %v129 = vadd.f32 %v106, %v128
    %130 = vdwg.mxu0
    %132 = vrot.lane.b32.xlu0 %v129, 96
    %v133 = vpop.permute.xlu0 %132
    %vm134 = vcmask 64512
    %v135 = vsel %vm134, %v129, 0
    %v137 = vsel %vm134, %v133, 0
    %139 = vmatpush.xpose.msra.mxu0 0.0
    %140 = vmatpush.xpose.msra.mxu0 0.0
    %141 = vmatpush.xpose.msra.mxu0 0.0
    %142 = vmatpush.xpose.msra.mxu0 0.0
    %143 = vmatpush.xpose.msra.mxu0 0.0
    %144 = vmatpush.xpose.msra.mxu0 0.0
    %145 = vmatpush.xpose.msra.mxu0 0.0
    %146 = vmatpush.xpose.msra.mxu0 0.0
    %147 = vmatpush.xpose.msra.mxu0 0.0
    %148 = vmatpush.xpose.msra.mxu0 0.0
    %149 = vmatpush.xpose.msra.mxu0 0.0
    %150 = vmatpush.xpose.msra.mxu0 0.0
    %151 = vmatpush.xpose.msra.mxu0 0.0
    %152 = vmatpush.xpose.msra.mxu0 0.0
    %153 = vmatpush.xpose.msra.mxu0 0.0
    %154 = vmatpush.xpose.msra.mxu0 %v137
    %155 = vmatmul.f32.gmra.mxu0 %v135
    %v156 = vpop.f32.mrf.mxu0
    %v157 = vadd.f32 0.0, %v156
    %158 = vdwg.mxu0
    %v159 = vmul.f32 %v157, 0.35355338
    %v160 = vsel %vm134, %v159, -inf
    %161 = vmax.xlane.f32.xlu0 %v160
    %v162 = vpop.xlane.xlu0 %161
    %v163 = vsub.f32 %v159, %v162
    %v164 = vmul.f32 %v163, 1.442695
    %v165 = vpow.pop %v164
    %v166 = vsel %vm134, %v165, 0.0
    %167 = vadd.xlane.f32.xlu0 %v166
    %v168 = vpop.xlane.xlu0 %167
    %v169 = vrcp.pop %v168
    %v170 = vmul.f32 %v165, %v169
    %171 = vrot.lane.b32.xlu0 %v129, 64
    %v172 = vpop.permute.xlu0 %171
    %v175 = vsel %vm134, %v170, 0
    %177 = vmatpush.msra.mxu0 0.0
    %178 = vmatpush.msra.mxu0 0.0
    %179 = vmatpush.msra.mxu0 0.0
    %180 = vmatpush.msra.mxu0 0.0
    %181 = vmatpush.msra.mxu0 0.0
    %182 = vmatpush.msra.mxu0 0.0
    %183 = vmatpush.msra.mxu0 0.0
    %184 = vmatpush.msra.mxu0 0.0
    %185 = vmatpush.msra.mxu0 0.0
    %186 = vmatpush.msra.mxu0 0.0
    %187 = vmatpush.msra.mxu0 0.0
    %188 = vmatpush.msra.mxu0 0.0
    %189 = vmatpush.msra.mxu0 0.0
    %190 = vmatpush.msra.mxu0 0.0
    %191 = vmatpush.msra.mxu0 0.0
    %192 = vmatpush.msra.mxu0 %v172
    %193 = vmatmul.f32.gmra.mxu0 %v175
    %v194 = vpop.f32.mrf.mxu0
    %v195 = vadd.f32 0.0, %v194
    %196 = vdwg.mxu0
    %197 = vrot.lane.b32.xlu0 %v129, 120
    %v198 = vpop.permute.xlu0 %197
    %199 = vrot.lane.b32.xlu0 %v129, 88
    %v200 = vpop.permute.xlu0 %199
    %v201 = vsel %vm134, %v198, 0
    %v203 = vsel %vm134, %v200, 0
    %205 = vmatpush.xpose.msra.mxu0 0.0
    %206 = vmatpush.xpose.msra.mxu0 0.0
    %207 = vmatpush.xpose.msra.mxu0 0.0
    %208 = vmatpush.xpose.msra.mxu0 0.0
    %209 = vmatpush.xpose.msra.mxu0 0.0
    %210 = vmatpush.xpose.msra.mxu0 0.0
    %211 = vmatpush.xpose.msra.mxu0 0.0
    %212 = vmatpush.xpose.msra.mxu0 0.0
    %213 = vmatpush.xpose.msra.mxu0 0.0
    %214 = vmatpush.xpose.msra.mxu0 0.0
    %215 = vmatpush.xpose.msra.mxu0 0.0
    %216 = vmatpush.xpose.msra.mxu0 0.0
    %217 = vmatpush.xpose.msra.mxu0 0.0
    %218 = vmatpush.xpose.msra.mxu0 0.0
    %219 = vmatpush.xpose.msra.mxu0 0.0
    %220 = vmatpush.xpose.msra.mxu0 %v203
    %221 = vmatmul.f32.gmra.mxu0 %v201
    %v222 = vpop.f32.mrf.mxu0
    %v223 = vadd.f32 0.0, %v222
    %224 = vdwg.mxu0
    %v225 = vmul.f32 %v223, 0.35355338
    %v226 = vsel %vm134, %v225, -inf
    %227 = vmax.xlane.f32.xlu0 %v226
    %v228 = vpop.xlane.xlu0 %227
    %v229 = vsub.f32 %v225, %v228
    %v230 = vmul.f32 %v229, 1.442695
    %v231 = vpow.pop %v230
    %v232 = vsel %vm134, %v231, 0.0
    %233 = vadd.xlane.f32.xlu0 %v232
    %v234 = vpop.xlane.xlu0 %233
    %v235 = vrcp.pop %v234
    %v236 = vmul.f32 %v231, %v235
    %237 = vrot.lane.b32.xlu0 %v129, 56
    %v238 = vpop.permute.xlu0 %237
    %v241 = vsel %vm134, %v236, 0
    %243 = vmatpush.msra.mxu0 0.0
    %244 = vmatpush.msra.mxu0 0.0
    %245 = vmatpush.msra.mxu0 0.0
    %246 = vmatpush.msra.mxu0 0.0
    %247 = vmatpush.msra.mxu0 0.0
    %248 = vmatpush.msra.mxu0 0.0
    %249 = vmatpush.msra.mxu0 0.0
    %250 = vmatpush.msra.mxu0 0.0
    %251 = vmatpush.msra.mxu0 0.0
    %252 = vmatpush.msra.mxu0 0.0
    %253 = vmatpush.msra.mxu0 0.0
    %254 = vmatpush.msra.mxu0 0.0
    %255 = vmatpush.msra.mxu0 0.0
    %256 = vmatpush.msra.mxu0 0.0
    %257 = vmatpush.msra.mxu0 0.0
    %258 = vmatpush.msra.mxu0 %v238
    %259 = vmatmul.f32.gmra.mxu0 %v241
    %v260 = vpop.f32.mrf.mxu0
    %v261 = vadd.f32 0.0, %v260
    %262 = vdwg.mxu0
    %263 = vrot.lane.b32.xlu0 %v129, 112
    %v264 = vpop.permute.xlu0 %263
    %265 = vrot.lane.b32.xlu0 %v129, 80
    %v266 = vpop.permute.xlu0 %265
    %v267 = vsel %vm134, %v264, 0
    %v269 = vsel %vm134, %v266, 0
    %271 = vmatpush.xpose.msra.mxu0 0.0
    %272 = vmatpush.xpose.msra.mxu0 0.0
    %273 = vmatpush.xpose.msra.mxu0 0.0
    %274 = vmatpush.xpose.msra.mxu0 0.0
    %275 = vmatpush.xpose.msra.mxu0 0.0
    %276 = vmatpush.xpose.msra.mxu0 0.0
    %277 = vmatpush.xpose.msra.mxu0 0.0
    %278 = vmatpush.xpose.msra.mxu0 0.0
    %279 = vmatpush.xpose.msra.mxu0 0.0
    %280 = vmatpush.xpose.msra.mxu0 0.0
    %281 = vmatpush.xpose.msra.mxu0 0.0
    %282 = vmatpush.xpose.msra.mxu0 0.0
    %283 = vmatpush.xpose.msra.mxu0 0.0
    %284 = vmatpush.xpose.msra.mxu0 0.0
    %285 = vmatpush.xpose.msra.mxu0 0.0
    %286 = vmatpush.xpose.msra.mxu0 %v269
    %287 = vmatmul.f32.gmra.mxu0 %v267
    %v288 = vpop.f32.mrf.mxu0
    %v289 = vadd.f32 0.0, %v288
    %290 = vdwg.mxu0
    %v291 = vmul.f32 %v289, 0.35355338
    %v292 = vsel %vm134, %v291, -inf
    %293 = vmax.xlane.f32.xlu0 %v292
    %v294 = vpop.xlane.xlu0 %293
    %v295 = vsub.f32 %v291, %v294
    %v296 = vmul.f32 %v295, 1.442695
    %v297 = vpow.pop %v296
    %v298 = vsel %vm134, %v297, 0.0
    %299 = vadd.xlane.f32.xlu0 %v298
    %v300 = vpop.xlane.xlu0 %299
    %v301 = vrcp.pop %v300
    %v302 = vmul.f32 %v297, %v301
    %303 = vrot.lane.b32.xlu0 %v129, 48
    %v304 = vpop.permute.xlu0 %303
    %v307 = vsel %vm134, %v302, 0
    %309 = vmatpush.msra.mxu0 0.0
    %310 = vmatpush.msra.mxu0 0.0
    %311 = vmatpush.msra.mxu0 0.0
    %312 = vmatpush.msra.mxu0 0.0
    %313 = vmatpush.msra.mxu0 0.0
    %314 = vmatpush.msra.mxu0 0.0
    %315 = vmatpush.msra.mxu0 0.0
    %316 = vmatpush.msra.mxu0 0.0
    %317 = vmatpush.msra.mxu0 0.0
    %318 = vmatpush.msra.mxu0 0.0
    %319 = vmatpush.msra.mxu0 0.0
    %320 = vmatpush.msra.mxu0 0.0
    %321 = vmatpush.msra.mxu0 0.0
    %322 = vmatpush.msra.mxu0 0.0
    %323 = vmatpush.msra.mxu0 0.0
    %324 = vmatpush.msra.mxu0 %v304
    %325 = vmatmul.f32.gmra.mxu0 %v307
    %v326 = vpop.f32.mrf.mxu0
    %v327 = vadd.f32 0.0, %v326
    %328 = vdwg.mxu0
    %329 = vrot.lane.b32.xlu0 %v129, 104
    %v330 = vpop.permute.xlu0 %329
    %331 = vrot.lane.b32.xlu0 %v129, 72
    %v332 = vpop.permute.xlu0 %331
    %v333 = vsel %vm134, %v330, 0
    %v335 = vsel %vm134, %v332, 0
    %337 = vmatpush.xpose.msra.mxu0 0.0
    %338 = vmatpush.xpose.msra.mxu0 0.0
    %339 = vmatpush.xpose.msra.mxu0 0.0
    %340 = vmatpush.xpose.msra.mxu0 0.0
    %341 = vmatpush.xpose.msra.mxu0 0.0
    %342 = vmatpush.xpose.msra.mxu0 0.0
    %343 = vmatpush.xpose.msra.mxu0 0.0
    %344 = vmatpush.xpose.msra.mxu0 0.0
    %345 = vmatpush.xpose.msra.mxu0 0.0
    %346 = vmatpush.xpose.msra.mxu0 0.0
    %347 = vmatpush.xpose.msra.mxu0 0.0
    %348 = vmatpush.xpose.msra.mxu0 0.0
    %349 = vmatpush.xpose.msra.mxu0 0.0
    %350 = vmatpush.xpose.msra.mxu0 0.0
    %351 = vmatpush.xpose.msra.mxu0 0.0
    %352 = vmatpush.xpose.msra.mxu0 %v335
    %353 = vmatmul.f32.gmra.mxu0 %v333
    %v354 = vpop.f32.mrf.mxu0
    %v355 = vadd.f32 0.0, %v354
    %356 = vdwg.mxu0
    %v357 = vmul.f32 %v355, 0.35355338
    %v358 = vsel %vm134, %v357, -inf
    %359 = vmax.xlane.f32.xlu0 %v358
    %v360 = vpop.xlane.xlu0 %359
    %v361 = vsub.f32 %v357, %v360
    %v362 = vmul.f32 %v361, 1.442695
    %v363 = vpow.pop %v362
    %v364 = vsel %vm134, %v363, 0.0
    %365 = vadd.xlane.f32.xlu0 %v364
    %v366 = vpop.xlane.xlu0 %365
    %v367 = vrcp.pop %v366
    %v368 = vmul.f32 %v363, %v367
    %369 = vrot.lane.b32.xlu0 %v129, 40
    %v370 = vpop.permute.xlu0 %369
    %v373 = vsel %vm134, %v368, 0
    %375 = vmatpush.msra.mxu0 0.0
    %376 = vmatpush.msra.mxu0 0.0
    %377 = vmatpush.msra.mxu0 0.0
    %378 = vmatpush.msra.mxu0 0.0
    %379 = vmatpush.msra.mxu0 0.0
    %380 = vmatpush.msra.mxu0 0.0
    %381 = vmatpush.msra.mxu0 0.0
    %382 = vmatpush.msra.mxu0 0.0
    %383 = vmatpush.msra.mxu0 0.0
    %384 = vmatpush.msra.mxu0 0.0
    %385 = vmatpush.msra.mxu0 0.0
    %386 = vmatpush.msra.mxu0 0.0
    %387 = vmatpush.msra.mxu0 0.0
    %388 = vmatpush.msra.mxu0 0.0
    %389 = vmatpush.msra.mxu0 0.0
    %390 = vmatpush.msra.mxu0 %v370
    %391 = vmatmul.f32.gmra.mxu0 %v373
    %v392 = vpop.f32.mrf.mxu0
    %v393 = vadd.f32 0.0, %v392
    %394 = vdwg.mxu0
    %396 = vrot.lane.b32.xlu0 %v261, 8
    %v397 = vpop.permute.xlu0 %396
    %400 = vrot.lane.b32.xlu0 %v327, 16
    %v401 = vpop.permute.xlu0 %400
    %404 = vrot.lane.b32.xlu0 %v393, 24
    %v405 = vpop.permute.xlu0 %404
    %v407 = vsel %vm134, %v195, %v397
    %vm408 = vcmask 130048
    %v409 = vsel %vm408, %v407, %v401
    %vm410 = vcmask 195584
    %v411 = vsel %vm410, %v409, %v405
    %416 = vrot.lane.b32.xlu0 %v101, 32
    %v417 = vpop.permute.xlu0 %416
    %418 = vrot.lane.b32.xlu0 %v102, 32
    %v419 = vpop.permute.xlu0 %418
    %420 = vrot.lane.b32.xlu0 %v103, 32
    %v421 = vpop.permute.xlu0 %420
    %422 = vrot.lane.b32.xlu0 %v104, 32
    %v423 = vpop.permute.xlu0 %422
    %429 = vrot.lane.b32.xlu0 %v106, 32
    %v430 = vpop.permute.xlu0 %429
    %v433 = vsel %vm107, %v411, 0
    %435 = vmatpush.msra.mxu0 0.0
    %436 = vmatpush.msra.mxu0 0.0
    %437 = vmatpush.msra.mxu0 0.0
    %438 = vmatpush.msra.mxu0 0.0
    %439 = vmatpush.msra.mxu0 0.0
    %440 = vmatpush.msra.mxu0 0.0
    %441 = vmatpush.msra.mxu0 0.0
    %442 = vmatpush.msra.mxu0 0.0
    %443 = vmatpush.msra.mxu0 0.0
    %444 = vmatpush.msra.mxu0 0.0
    %445 = vmatpush.msra.mxu0 0.0
    %446 = vmatpush.msra.mxu0 0.0
    %447 = vmatpush.msra.mxu0 %v423
    %448 = vmatpush.msra.mxu0 %v421
    %449 = vmatpush.msra.mxu0 %v419
    %450 = vmatpush.msra.mxu0 %v417
    %451 = vmatmul.f32.gmra.mxu0 %v433
    %v452 = vpop.f32.mrf.mxu0
    %v453 = vadd.f32 %v430, %v452
    %454 = vdwg.mxu0
    %v455 = vld [vmem:[#allocation7 + $0x2] sm:$0x1]
    %v456 = vadd.f32 %v100, %v453
    %v457 = vsel %vm107, %v456, 0.0
    %458 = vadd.xlane.f32.xlu0 %v457
    %v459 = vpop.xlane.xlu0 %458
    %v460 = vrcp.pop 32.0
    %v461 = vmul.f32 32.0, %v460
    %v462 = vsub.f32 1.0, %v461
    %v463 = vmul.f32 %v460, %v462
    %v464 = vadd.f32 %v460, %v463
    %vm465 = vweird.f32 %v460
    %v466 = vsel %vm465, %v460, %v464
    %v467 = vmul.f32 %v459, %v466
    %v468 = vsub.f32 %v456, %v467
    %v469 = vmul.f32 %v468, %v468
    %v470 = vsel %vm107, %v469, 0.0
    %471 = vadd.xlane.f32.xlu0 %v470
    %v472 = vpop.xlane.xlu0 %471
    %v473 = vmul.f32 %v472, %v466
    %v474 = vadd.f32 %v473, 1e-05
    %v475 = vrsqrt.pop %v474
    %v476 = vmul.f32 %v475, %v474
    %v477 = vmul.f32 %v476, %v475
    %v478 = vmul.f32 0.5, %v477
    %v479 = vsub.f32 1.5, %v478
    %v480 = vmul.f32 %v475, %v479
    %vm481 = vweird.f32 %v474
    %vm482 = vweird.f32 %v475
    %vm483 = vmor %vm481, %vm482
    %v484 = vsel %vm483, %v475, %v480
    %v485 = vmul.f32 %v468, %v484
    %v486 = vperm.slane %v455, 0
    %v487 = vmul.f32 %v485, %v486
    %489 = vrot.lane.b32.xlu0 %v486, 96
    %v490 = vpop.permute.xlu0 %489
    %v492 = vadd.f32 %v487, %v490
    %v493 = vld [vmem:[#allocation5 + $0x8] sm:$0xff]
    %v494 = vld [vmem:[#allocation5 + $0x20] sm:$0xff]
    %v495 = vld [vmem:[#allocation5 + $0x38] sm:$0xff]
    %v496 = vld [vmem:[#allocation5 + $0x50] sm:$0xff]
    %v497 = vld [vmem:[#allocation7 + $0x4] sm:$0x1]
    %502 = vrot.lane.b32.xlu0 %v493, 64
    %v503 = vpop.permute.xlu0 %502
    %504 = vrot.lane.b32.xlu0 %v494, 64
    %v505 = vpop.permute.xlu0 %504
    %506 = vrot.lane.b32.xlu0 %v495, 64
    %v507 = vpop.permute.xlu0 %506
    %508 = vrot.lane.b32.xlu0 %v496, 64
    %v509 = vpop.permute.xlu0 %508
    %v515 = vsel %vm107, %v99, 0
    %517 = vmatpush.msra.mxu0 0.0
    %518 = vmatpush.msra.mxu0 0.0
    %519 = vmatpush.msra.mxu0 0.0
    %520 = vmatpush.msra.mxu0 0.0
    %521 = vmatpush.msra.mxu0 0.0
    %522 = vmatpush.msra.mxu0 0.0
    %523 = vmatpush.msra.mxu0 0.0
    %524 = vmatpush.msra.mxu0 0.0
    %525 = vmatpush.msra.mxu0 0.0
    %526 = vmatpush.msra.mxu0 0.0
    %527 = vmatpush.msra.mxu0 0.0
    %528 = vmatpush.msra.mxu0 0.0
    %529 = vmatpush.msra.mxu0 %v509
    %530 = vmatpush.msra.mxu0 %v507
    %531 = vmatpush.msra.mxu0 %v505
    %532 = vmatpush.msra.mxu0 %v503
    %533 = vmatmul.f32.gmra.mxu0 %v515
    %v534 = vpop.f32.mrf.mxu0
    %v535 = vadd.f32 %v497, %v534
    %536 = vdwg.mxu0
    %537 = vrot.lane.b32.xlu0 %v493, 32
    %v538 = vpop.permute.xlu0 %537
    %539 = vrot.lane.b32.xlu0 %v494, 32
    %v540 = vpop.permute.xlu0 %539
    %541 = vrot.lane.b32.xlu0 %v495, 32
    %v542 = vpop.permute.xlu0 %541
    %543 = vrot.lane.b32.xlu0 %v496, 32
    %v544 = vpop.permute.xlu0 %543
    %v550 = vperm.slane %v497, 0
    %551 = vrot.lane.b32.xlu0 %v550, 96
    %v552 = vpop.permute.xlu0 %551
    %v555 = vsel %vm107, %v535, 0
    %557 = vmatpush.msra.mxu0 0.0
    %558 = vmatpush.msra.mxu0 0.0
    %559 = vmatpush.msra.mxu0 0.0
    %560 = vmatpush.msra.mxu0 0.0
    %561 = vmatpush.msra.mxu0 0.0
    %562 = vmatpush.msra.mxu0 0.0
    %563 = vmatpush.msra.mxu0 0.0
    %564 = vmatpush.msra.mxu0 0.0
    %565 = vmatpush.msra.mxu0 0.0
    %566 = vmatpush.msra.mxu0 0.0
    %567 = vmatpush.msra.mxu0 0.0
    %568 = vmatpush.msra.mxu0 0.0
    %569 = vmatpush.msra.mxu0 %v544
    %570 = vmatpush.msra.mxu0 %v542
    %571 = vmatpush.msra.mxu0 %v540
    %572 = vmatpush.msra.mxu0 %v538
    %573 = vmatmul.f32.gmra.mxu0 %v555
    %v574 = vpop.f32.mrf.mxu0
    %v575 = vadd.f32 %v552, %v574
    %576 = vdwg.mxu0
    %v577 = vperm.slane %v575, 0
    %v578 = vadd.f32 %v492, %v577
    %v579 = vsel %vm107, %v578, 0.0
    %580 = vadd.xlane.f32.xlu0 %v579
    %v581 = vpop.xlane.xlu0 %580
    %v582 = vmul.f32 %v581, %v466
    %v583 = vsub.f32 %v578, %v582
    %v584 = vmul.f32 %v583, %v583
    %v585 = vsel %vm107, %v584, 0.0
    %586 = vadd.xlane.f32.xlu0 %v585
    %v587 = vpop.xlane.xlu0 %586
    %v588 = vmul.f32 %v587, %v466
    %v589 = vadd.f32 %v588, 1e-05
    %v590 = vrsqrt.pop %v589
    %v591 = vmul.f32 %v590, %v589
    %v592 = vmul.f32 %v591, %v590
    %v593 = vmul.f32 0.5, %v592
    %v594 = vsub.f32 1.5, %v593
    %v595 = vmul.f32 %v590, %v594
    %vm596 = vweird.f32 %v589
    %vm597 = vweird.f32 %v590
    %vm598 = vmor %vm596, %vm597
    %v599 = vsel %vm598, %v590, %v595
    %v600 = vmul.f32 %v583, %v599
    %v601 = vperm.slane %v497, 0
    %603 = vrot.lane.b32.xlu0 %v601, 64
    %v604 = vpop.permute.xlu0 %603
    %v606 = vmul.f32 %v600, %v604
    %607 = vrot.lane.b32.xlu0 %v601, 32
    %v608 = vpop.permute.xlu0 %607
    %v610 = vadd.f32 %v606, %v608
    %v611 = vld [vmem:[#allocation5 + $0x10] sm:$0xff]
    %v612 = vld [vmem:[#allocation5 + $0x28] sm:$0xff]
    %v613 = vld [vmem:[#allocation5 + $0x40] sm:$0xff]
    %v614 = vld [vmem:[#allocation5 + $0x58] sm:$0xff]
    %v615 = vld [vmem:[#allocation7 + $0x6] sm:$0x1]
    %v616 = vperm.slane %v615, 0
    %v618 = vsel %vm107, %v610, 0
    %620 = vmatpush.msra.mxu0 0.0
    %621 = vmatpush.msra.mxu0 0.0
    %622 = vmatpush.msra.mxu0 0.0
    %623 = vmatpush.msra.mxu0 0.0
    %624 = vmatpush.msra.mxu0 0.0
    %625 = vmatpush.msra.mxu0 0.0
    %626 = vmatpush.msra.mxu0 0.0
    %627 = vmatpush.msra.mxu0 0.0
    %628 = vmatpush.msra.mxu0 0.0
    %629 = vmatpush.msra.mxu0 0.0
    %630 = vmatpush.msra.mxu0 0.0
    %631 = vmatpush.msra.mxu0 0.0
    %632 = vmatpush.msra.mxu0 %v614
    %633 = vmatpush.msra.mxu0 %v613
    %634 = vmatpush.msra.mxu0 %v612
    %635 = vmatpush.msra.mxu0 %v611
    %636 = vmatmul.f32.gmra.mxu0 %v618
    %v637 = vpop.f32.mrf.mxu0
    %v638 = vadd.f32 %v616, %v637
    %639 = vdwg.mxu0
    %v640 = vld [vmem:[#allocation5 + $0x60] sm:$0xff]
    %v641 = vld [vmem:[#allocation5 + $0x78] sm:$0xff]
    %v642 = vld [vmem:[#allocation5 + $0x90] sm:$0xff]
    %v643 = vld [vmem:[#allocation5 + $0xa8] sm:$0xff]
    %v644 = vld [vmem:[#allocation7 + $0x1] sm:$0x1]
    %v645 = vperm.slane %v644, 0
    %v647 = vsel %vm107, %v638, 0
    %649 = vmatpush.msra.mxu0 0.0
    %650 = vmatpush.msra.mxu0 0.0
    %651 = vmatpush.msra.mxu0 0.0
    %652 = vmatpush.msra.mxu0 0.0
    %653 = vmatpush.msra.mxu0 0.0
    %654 = vmatpush.msra.mxu0 0.0
    %655 = vmatpush.msra.mxu0 0.0
    %656 = vmatpush.msra.mxu0 0.0
    %657 = vmatpush.msra.mxu0 0.0
    %658 = vmatpush.msra.mxu0 0.0
    %659 = vmatpush.msra.mxu0 0.0
    %660 = vmatpush.msra.mxu0 0.0
    %661 = vmatpush.msra.mxu0 %v643
    %662 = vmatpush.msra.mxu0 %v642
    %663 = vmatpush.msra.mxu0 %v641
    %664 = vmatpush.msra.mxu0 %v640
    %665 = vmatmul.f32.gmra.mxu0 %v647
    %v666 = vpop.f32.mrf.mxu0
    %v667 = vadd.f32 %v645, %v666
    %668 = vdwg.mxu0
    %670 = vrot.lane.b32.xlu0 %v667, 96
    %v671 = vpop.permute.xlu0 %670
    %v672 = vsel %vm134, %v667, 0
    %v674 = vsel %vm134, %v671, 0
    %676 = vmatpush.xpose.msra.mxu0 0.0
    %677 = vmatpush.xpose.msra.mxu0 0.0
    %678 = vmatpush.xpose.msra.mxu0 0.0
    %679 = vmatpush.xpose.msra.mxu0 0.0
    %680 = vmatpush.xpose.msra.mxu0 0.0
    %681 = vmatpush.xpose.msra.mxu0 0.0
    %682 = vmatpush.xpose.msra.mxu0 0.0
    %683 = vmatpush.xpose.msra.mxu0 0.0
    %684 = vmatpush.xpose.msra.mxu0 0.0
    %685 = vmatpush.xpose.msra.mxu0 0.0
    %686 = vmatpush.xpose.msra.mxu0 0.0
    %687 = vmatpush.xpose.msra.mxu0 0.0
    %688 = vmatpush.xpose.msra.mxu0 0.0
    %689 = vmatpush.xpose.msra.mxu0 0.0
    %690 = vmatpush.xpose.msra.mxu0 0.0
    %691 = vmatpush.xpose.msra.mxu0 %v674
    %692 = vmatmul.f32.gmra.mxu0 %v672
    %v693 = vpop.f32.mrf.mxu0
    %v694 = vadd.f32 0.0, %v693
    %695 = vdwg.mxu0
    %v696 = vmul.f32 %v694, 0.35355338
    %v697 = vsel %vm134, %v696, -inf
    %698 = vmax.xlane.f32.xlu0 %v697
    %v699 = vpop.xlane.xlu0 %698
    %v700 = vsub.f32 %v696, %v699
    %v701 = vmul.f32 %v700, 1.442695
    %v702 = vpow.pop %v701
    %v703 = vsel %vm134, %v702, 0.0
    %704 = vadd.xlane.f32.xlu0 %v703
    %v705 = vpop.xlane.xlu0 %704
    %v706 = vrcp.pop %v705
    %v707 = vmul.f32 %v702, %v706
    %708 = vrot.lane.b32.xlu0 %v667, 64
    %v709 = vpop.permute.xlu0 %708
    %v712 = vsel %vm134, %v707, 0
    %714 = vmatpush.msra.mxu0 0.0
    %715 = vmatpush.msra.mxu0 0.0
    %716 = vmatpush.msra.mxu0 0.0
    %717 = vmatpush.msra.mxu0 0.0
    %718 = vmatpush.msra.mxu0 0.0
    %719 = vmatpush.msra.mxu0 0.0
    %720 = vmatpush.msra.mxu0 0.0
    %721 = vmatpush.msra.mxu0 0.0
    %722 = vmatpush.msra.mxu0 0.0
    %723 = vmatpush.msra.mxu0 0.0
    %724 = vmatpush.msra.mxu0 0.0
    %725 = vmatpush.msra.mxu0 0.0
    %726 = vmatpush.msra.mxu0 0.0
    %727 = vmatpush.msra.mxu0 0.0
    %728 = vmatpush.msra.mxu0 0.0
    %729 = vmatpush.msra.mxu0 %v709
    %730 = vmatmul.f32.gmra.mxu0 %v712
    %v731 = vpop.f32.mrf.mxu0
    %v732 = vadd.f32 0.0, %v731
    %733 = vdwg.mxu0
    %734 = vrot.lane.b32.xlu0 %v667, 120
    %v735 = vpop.permute.xlu0 %734
    %736 = vrot.lane.b32.xlu0 %v667, 88
    %v737 = vpop.permute.xlu0 %736
    %v738 = vsel %vm134, %v735, 0
    %v740 = vsel %vm134, %v737, 0
    %742 = vmatpush.xpose.msra.mxu0 0.0
    %743 = vmatpush.xpose.msra.mxu0 0.0
    %744 = vmatpush.xpose.msra.mxu0 0.0
    %745 = vmatpush.xpose.msra.mxu0 0.0
    %746 = vmatpush.xpose.msra.mxu0 0.0
    %747 = vmatpush.xpose.msra.mxu0 0.0
    %748 = vmatpush.xpose.msra.mxu0 0.0
    %749 = vmatpush.xpose.msra.mxu0 0.0
    %750 = vmatpush.xpose.msra.mxu0 0.0
    %751 = vmatpush.xpose.msra.mxu0 0.0
    %752 = vmatpush.xpose.msra.mxu0 0.0
    %753 = vmatpush.xpose.msra.mxu0 0.0
    %754 = vmatpush.xpose.msra.mxu0 0.0
    %755 = vmatpush.xpose.msra.mxu0 0.0
    %756 = vmatpush.xpose.msra.mxu0 0.0
    %757 = vmatpush.xpose.msra.mxu0 %v740
    %758 = vmatmul.f32.gmra.mxu0 %v738
    %v759 = vpop.f32.mrf.mxu0
    %v760 = vadd.f32 0.0, %v759
    %761 = vdwg.mxu0
    %v762 = vmul.f32 %v760, 0.35355338
    %v763 = vsel %vm134, %v762, -inf
    %764 = vmax.xlane.f32.xlu0 %v763
    %v765 = vpop.xlane.xlu0 %764
    %v766 = vsub.f32 %v762, %v765
    %v767 = vmul.f32 %v766, 1.442695
    %v768 = vpow.pop %v767
    %v769 = vsel %vm134, %v768, 0.0
    %770 = vadd.xlane.f32.xlu0 %v769
    %v771 = vpop.xlane.xlu0 %770
    %v772 = vrcp.pop %v771
    %v773 = vmul.f32 %v768, %v772
    %774 = vrot.lane.b32.xlu0 %v667, 56
    %v775 = vpop.permute.xlu0 %774
    %v778 = vsel %vm134, %v773, 0
    %780 = vmatpush.msra.mxu0 0.0
    %781 = vmatpush.msra.mxu0 0.0
    %782 = vmatpush.msra.mxu0 0.0
    %783 = vmatpush.msra.mxu0 0.0
    %784 = vmatpush.msra.mxu0 0.0
    %785 = vmatpush.msra.mxu0 0.0
    %786 = vmatpush.msra.mxu0 0.0
    %787 = vmatpush.msra.mxu0 0.0
    %788 = vmatpush.msra.mxu0 0.0
    %789 = vmatpush.msra.mxu0 0.0
    %790 = vmatpush.msra.mxu0 0.0
    %791 = vmatpush.msra.mxu0 0.0
    %792 = vmatpush.msra.mxu0 0.0
    %793 = vmatpush.msra.mxu0 0.0
    %794 = vmatpush.msra.mxu0 0.0
    %795 = vmatpush.msra.mxu0 %v775
    %796 = vmatmul.f32.gmra.mxu0 %v778
    %v797 = vpop.f32.mrf.mxu0
    %v798 = vadd.f32 0.0, %v797
    %799 = vdwg.mxu0
    %800 = vrot.lane.b32.xlu0 %v667, 112
    %v801 = vpop.permute.xlu0 %800
    %802 = vrot.lane.b32.xlu0 %v667, 80
    %v803 = vpop.permute.xlu0 %802
    %v804 = vsel %vm134, %v801, 0
    %v806 = vsel %vm134, %v803, 0
    %808 = vmatpush.xpose.msra.mxu0 0.0
    %809 = vmatpush.xpose.msra.mxu0 0.0
    %810 = vmatpush.xpose.msra.mxu0 0.0
    %811 = vmatpush.xpose.msra.mxu0 0.0
    %812 = vmatpush.xpose.msra.mxu0 0.0
    %813 = vmatpush.xpose.msra.mxu0 0.0
    %814 = vmatpush.xpose.msra.mxu0 0.0
    %815 = vmatpush.xpose.msra.mxu0 0.0
    %816 = vmatpush.xpose.msra.mxu0 0.0
    %817 = vmatpush.xpose.msra.mxu0 0.0
    %818 = vmatpush.xpose.msra.mxu0 0.0
    %819 = vmatpush.xpose.msra.mxu0 0.0
    %820 = vmatpush.xpose.msra.mxu0 0.0
    %821 = vmatpush.xpose.msra.mxu0 0.0
    %822 = vmatpush.xpose.msra.mxu0 0.0
    %823 = vmatpush.xpose.msra.mxu0 %v806
    %824 = vmatmul.f32.gmra.mxu0 %v804
    %v825 = vpop.f32.mrf.mxu0
    %v826 = vadd.f32 0.0, %v825
    %827 = vdwg.mxu0
    %v828 = vmul.f32 %v826, 0.35355338
    %v829 = vsel %vm134, %v828, -inf
    %830 = vmax.xlane.f32.xlu0 %v829
    %v831 = vpop.xlane.xlu0 %830
    %v832 = vsub.f32 %v828, %v831
    %v833 = vmul.f32 %v832, 1.442695
    %v834 = vpow.pop %v833
    %v835 = vsel %vm134, %v834, 0.0
    %836 = vadd.xlane.f32.xlu0 %v835
    %v837 = vpop.xlane.xlu0 %836
    %v838 = vrcp.pop %v837
    %v839 = vmul.f32 %v834, %v838
    %840 = vrot.lane.b32.xlu0 %v667, 48
    %v841 = vpop.permute.xlu0 %840
    %v844 = vsel %vm134, %v839, 0
    %846 = vmatpush.msra.mxu0 0.0
    %847 = vmatpush.msra.mxu0 0.0
    %848 = vmatpush.msra.mxu0 0.0
    %849 = vmatpush.msra.mxu0 0.0
    %850 = vmatpush.msra.mxu0 0.0
    %851 = vmatpush.msra.mxu0 0.0
    %852 = vmatpush.msra.mxu0 0.0
    %853 = vmatpush.msra.mxu0 0.0
    %854 = vmatpush.msra.mxu0 0.0
    %855 = vmatpush.msra.mxu0 0.0
    %856 = vmatpush.msra.mxu0 0.0
    %857 = vmatpush.msra.mxu0 0.0
    %858 = vmatpush.msra.mxu0 0.0
    %859 = vmatpush.msra.mxu0 0.0
    %860 = vmatpush.msra.mxu0 0.0
    %861 = vmatpush.msra.mxu0 %v841
    %862 = vmatmul.f32.gmra.mxu0 %v844
    %v863 = vpop.f32.mrf.mxu0
    %v864 = vadd.f32 0.0, %v863
    %865 = vdwg.mxu0
    %866 = vrot.lane.b32.xlu0 %v667, 104
    %v867 = vpop.permute.xlu0 %866
    %868 = vrot.lane.b32.xlu0 %v667, 72
    %v869 = vpop.permute.xlu0 %868
    %v870 = vsel %vm134, %v867, 0
    %v872 = vsel %vm134, %v869, 0
    %874 = vmatpush.xpose.msra.mxu0 0.0
    %875 = vmatpush.xpose.msra.mxu0 0.0
    %876 = vmatpush.xpose.msra.mxu0 0.0
    %877 = vmatpush.xpose.msra.mxu0 0.0
    %878 = vmatpush.xpose.msra.mxu0 0.0
    %879 = vmatpush.xpose.msra.mxu0 0.0
    %880 = vmatpush.xpose.msra.mxu0 0.0
    %881 = vmatpush.xpose.msra.mxu0 0.0
    %882 = vmatpush.xpose.msra.mxu0 0.0
    %883 = vmatpush.xpose.msra.mxu0 0.0
    %884 = vmatpush.xpose.msra.mxu0 0.0
    %885 = vmatpush.xpose.msra.mxu0 0.0
    %886 = vmatpush.xpose.msra.mxu0 0.0
    %887 = vmatpush.xpose.msra.mxu0 0.0
    %888 = vmatpush.xpose.msra.mxu0 0.0
    %889 = vmatpush.xpose.msra.mxu0 %v872
    %890 = vmatmul.f32.gmra.mxu0 %v870
    %v891 = vpop.f32.mrf.mxu0
    %v892 = vadd.f32 0.0, %v891
    %893 = vdwg.mxu0
    %v894 = vmul.f32 %v892, 0.35355338
    %v895 = vsel %vm134, %v894, -inf
    %896 = vmax.xlane.f32.xlu0 %v895
    %v897 = vpop.xlane.xlu0 %896
    %v898 = vsub.f32 %v894, %v897
    %v899 = vmul.f32 %v898, 1.442695
    %v900 = vpow.pop %v899
    %v901 = vsel %vm134, %v900, 0.0
    %902 = vadd.xlane.f32.xlu0 %v901
    %v903 = vpop.xlane.xlu0 %902
    %v904 = vrcp.pop %v903
    %v905 = vmul.f32 %v900, %v904
    %906 = vrot.lane.b32.xlu0 %v667, 40
    %v907 = vpop.permute.xlu0 %906
    %v910 = vsel %vm134, %v905, 0
    %912 = vmatpush.msra.mxu0 0.0
    %913 = vmatpush.msra.mxu0 0.0
    %914 = vmatpush.msra.mxu0 0.0
    %915 = vmatpush.msra.mxu0 0.0
    %916 = vmatpush.msra.mxu0 0.0
    %917 = vmatpush.msra.mxu0 0.0
    %918 = vmatpush.msra.mxu0 0.0
    %919 = vmatpush.msra.mxu0 0.0
    %920 = vmatpush.msra.mxu0 0.0
    %921 = vmatpush.msra.mxu0 0.0
    %922 = vmatpush.msra.mxu0 0.0
    %923 = vmatpush.msra.mxu0 0.0
    %924 = vmatpush.msra.mxu0 0.0
    %925 = vmatpush.msra.mxu0 0.0
    %926 = vmatpush.msra.mxu0 0.0
    %927 = vmatpush.msra.mxu0 %v907
    %928 = vmatmul.f32.gmra.mxu0 %v910
    %v929 = vpop.f32.mrf.mxu0
    %v930 = vadd.f32 0.0, %v929
    %931 = vdwg.mxu0
    %933 = vrot.lane.b32.xlu0 %v798, 8
    %v934 = vpop.permute.xlu0 %933
    %937 = vrot.lane.b32.xlu0 %v864, 16
    %v938 = vpop.permute.xlu0 %937
    %941 = vrot.lane.b32.xlu0 %v930, 24
    %v942 = vpop.permute.xlu0 %941
    %v944 = vsel %vm134, %v732, %v934
    %v945 = vsel %vm408, %v944, %v938
    %v946 = vsel %vm410, %v945, %v942
    %951 = vrot.lane.b32.xlu0 %v640, 32
    %v952 = vpop.permute.xlu0 %951
    %953 = vrot.lane.b32.xlu0 %v641, 32
    %v954 = vpop.permute.xlu0 %953
    %955 = vrot.lane.b32.xlu0 %v642, 32
    %v956 = vpop.permute.xlu0 %955
    %957 = vrot.lane.b32.xlu0 %v643, 32
    %v958 = vpop.permute.xlu0 %957
    %964 = vrot.lane.b32.xlu0 %v645, 32
    %v965 = vpop.permute.xlu0 %964
    %v968 = vsel %vm107, %v946, 0
    %970 = vmatpush.msra.mxu0 0.0
    %971 = vmatpush.msra.mxu0 0.0
    %972 = vmatpush.msra.mxu0 0.0
    %973 = vmatpush.msra.mxu0 0.0
    %974 = vmatpush.msra.mxu0 0.0
    %975 = vmatpush.msra.mxu0 0.0
    %976 = vmatpush.msra.mxu0 0.0
    %977 = vmatpush.msra.mxu0 0.0
    %978 = vmatpush.msra.mxu0 0.0
    %979 = vmatpush.msra.mxu0 0.0
    %980 = vmatpush.msra.mxu0 0.0
    %981 = vmatpush.msra.mxu0 0.0
    %982 = vmatpush.msra.mxu0 %v958
    %983 = vmatpush.msra.mxu0 %v956
    %984 = vmatpush.msra.mxu0 %v954
    %985 = vmatpush.msra.mxu0 %v952
    %986 = vmatmul.f32.gmra.mxu0 %v968
    %v987 = vpop.f32.mrf.mxu0
    %v988 = vadd.f32 %v965, %v987
    %989 = vdwg.mxu0
    %v990 = vld [vmem:[#allocation7 + $0x3] sm:$0x1]
    %v991 = vadd.f32 %v638, %v988
    %v992 = vsel %vm107, %v991, 0.0
    %993 = vadd.xlane.f32.xlu0 %v992
    %v994 = vpop.xlane.xlu0 %993
    %v995 = vmul.f32 %v994, %v466
    %v996 = vsub.f32 %v991, %v995
    %v997 = vmul.f32 %v996, %v996
    %v998 = vsel %vm107, %v997, 0.0
    %999 = vadd.xlane.f32.xlu0 %v998
    %v1000 = vpop.xlane.xlu0 %999
    %v1001 = vmul.f32 %v1000, %v466
    %v1002 = vadd.f32 %v1001, 1e-05
    %v1003 = vrsqrt.pop %v1002
    %v1004 = vmul.f32 %v1003, %v1002
    %v1005 = vmul.f32 %v1004, %v1003
    %v1006 = vmul.f32 0.5, %v1005
    %v1007 = vsub.f32 1.5, %v1006
    %v1008 = vmul.f32 %v1003, %v1007
    %vm1009 = vweird.f32 %v1002
    %vm1010 = vweird.f32 %v1003
    %vm1011 = vmor %vm1009, %vm1010
    %v1012 = vsel %vm1011, %v1003, %v1008
    %v1013 = vmul.f32 %v996, %v1012
    %v1014 = vperm.slane %v990, 0
    %v1015 = vmul.f32 %v1013, %v1014
    %1017 = vrot.lane.b32.xlu0 %v1014, 96
    %v1018 = vpop.permute.xlu0 %1017
    %v1020 = vadd.f32 %v1015, %v1018
    %v1021 = vld [vmem:[#allocation5 + $0x68] sm:$0xff]
    %v1022 = vld [vmem:[#allocation5 + $0x80] sm:$0xff]
    %v1023 = vld [vmem:[#allocation5 + $0x98] sm:$0xff]
    %v1024 = vld [vmem:[#allocation5 + $0xb0] sm:$0xff]
    %v1025 = vld [vmem:[#allocation7 + $0x5] sm:$0x1]
    %1030 = vrot.lane.b32.xlu0 %v1021, 64
    %v1031 = vpop.permute.xlu0 %1030
    %1032 = vrot.lane.b32.xlu0 %v1022, 64
    %v1033 = vpop.permute.xlu0 %1032
    %1034 = vrot.lane.b32.xlu0 %v1023, 64
    %v1035 = vpop.permute.xlu0 %1034
    %1036 = vrot.lane.b32.xlu0 %v1024, 64
    %v1037 = vpop.permute.xlu0 %1036
    %1042 = vmatpush.msra.mxu0 0.0
    %1043 = vmatpush.msra.mxu0 0.0
    %1044 = vmatpush.msra.mxu0 0.0
    %1045 = vmatpush.msra.mxu0 0.0
    %1046 = vmatpush.msra.mxu0 0.0
    %1047 = vmatpush.msra.mxu0 0.0
    %1048 = vmatpush.msra.mxu0 0.0
    %1049 = vmatpush.msra.mxu0 0.0
    %1050 = vmatpush.msra.mxu0 0.0
    %1051 = vmatpush.msra.mxu0 0.0
    %1052 = vmatpush.msra.mxu0 0.0
    %1053 = vmatpush.msra.mxu0 0.0
    %1054 = vmatpush.msra.mxu0 %v1037
    %1055 = vmatpush.msra.mxu0 %v1035
    %1056 = vmatpush.msra.mxu0 %v1033
    %1057 = vmatpush.msra.mxu0 %v1031
    %1058 = vmatmul.f32.gmra.mxu0 %v515
    %v1059 = vpop.f32.mrf.mxu0
    %v1060 = vadd.f32 %v1025, %v1059
    %1061 = vdwg.mxu0
    %1062 = vrot.lane.b32.xlu0 %v1021, 32
    %v1063 = vpop.permute.xlu0 %1062
    %1064 = vrot.lane.b32.xlu0 %v1022, 32
    %v1065 = vpop.permute.xlu0 %1064
    %1066 = vrot.lane.b32.xlu0 %v1023, 32
    %v1067 = vpop.permute.xlu0 %1066
    %1068 = vrot.lane.b32.xlu0 %v1024, 32
    %v1069 = vpop.permute.xlu0 %1068
    %v1075 = vperm.slane %v1025, 0
    %1076 = vrot.lane.b32.xlu0 %v1075, 96
    %v1077 = vpop.permute.xlu0 %1076
    %v1080 = vsel %vm107, %v1060, 0
    %1082 = vmatpush.msra.mxu0 0.0
    %1083 = vmatpush.msra.mxu0 0.0
    %1084 = vmatpush.msra.mxu0 0.0
    %1085 = vmatpush.msra.mxu0 0.0
    %1086 = vmatpush.msra.mxu0 0.0
    %1087 = vmatpush.msra.mxu0 0.0
    %1088 = vmatpush.msra.mxu0 0.0
    %1089 = vmatpush.msra.mxu0 0.0
    %1090 = vmatpush.msra.mxu0 0.0
    %1091 = vmatpush.msra.mxu0 0.0
    %1092 = vmatpush.msra.mxu0 0.0
    %1093 = vmatpush.msra.mxu0 0.0
    %1094 = vmatpush.msra.mxu0 %v1069
    %1095 = vmatpush.msra.mxu0 %v1067
    %1096 = vmatpush.msra.mxu0 %v1065
    %1097 = vmatpush.msra.mxu0 %v1063
    %1098 = vmatmul.f32.gmra.mxu0 %v1080
    %v1099 = vpop.f32.mrf.mxu0
    %v1100 = vadd.f32 %v1077, %v1099
    %1101 = vdwg.mxu0
    %v1102 = vperm.slane %v1100, 0
    %v1103 = vadd.f32 %v1020, %v1102
    %v1104 = vsel %vm107, %v1103, 0.0
    %1105 = vadd.xlane.f32.xlu0 %v1104
    %v1106 = vpop.xlane.xlu0 %1105
    %v1107 = vmul.f32 %v1106, %v466
    %v1108 = vsub.f32 %v1103, %v1107
    %v1109 = vmul.f32 %v1108, %v1108
    %v1110 = vsel %vm107, %v1109, 0.0
    %1111 = vadd.xlane.f32.xlu0 %v1110
    %v1112 = vpop.xlane.xlu0 %1111
    %v1113 = vmul.f32 %v1112, %v466
    %v1114 = vadd.f32 %v1113, 1e-05
    %v1115 = vrsqrt.pop %v1114
    %v1116 = vmul.f32 %v1115, %v1114
    %v1117 = vmul.f32 %v1116, %v1115
    %v1118 = vmul.f32 0.5, %v1117
    %v1119 = vsub.f32 1.5, %v1118
    %v1120 = vmul.f32 %v1115, %v1119
    %vm1121 = vweird.f32 %v1114
    %vm1122 = vweird.f32 %v1115
    %vm1123 = vmor %vm1121, %vm1122
    %v1124 = vsel %vm1123, %v1115, %v1120
    %v1125 = vmul.f32 %v1108, %v1124
    %v1126 = vperm.slane %v1025, 0
    %1128 = vrot.lane.b32.xlu0 %v1126, 64
    %v1129 = vpop.permute.xlu0 %1128
    %v1131 = vmul.f32 %v1125, %v1129
    %1132 = vrot.lane.b32.xlu0 %v1126, 32
    %v1133 = vpop.permute.xlu0 %1132
    %v1135 = vadd.f32 %v1131, %v1133
    %v1136 = vld [vmem:[#allocation5 + $0x70] sm:$0xff]
    %v1137 = vld [vmem:[#allocation5 + $0x88] sm:$0xff]
    %v1138 = vld [vmem:[#allocation5 + $0xa0] sm:$0xff]
    %v1139 = vld [vmem:[#allocation5 + $0xb8] sm:$0xff]
    %v1140 = vld [vmem:[#allocation7 + $0x7] sm:$0x1]
    %v1141 = vperm.slane %v1140, 0
    %v1143 = vsel %vm107, %v1135, 0
    %1145 = vmatpush.msra.mxu0 0.0
    %1146 = vmatpush.msra.mxu0 0.0
    %1147 = vmatpush.msra.mxu0 0.0
    %1148 = vmatpush.msra.mxu0 0.0
    %1149 = vmatpush.msra.mxu0 0.0
    %1150 = vmatpush.msra.mxu0 0.0
    %1151 = vmatpush.msra.mxu0 0.0
    %1152 = vmatpush.msra.mxu0 0.0
    %1153 = vmatpush.msra.mxu0 0.0
    %1154 = vmatpush.msra.mxu0 0.0
    %1155 = vmatpush.msra.mxu0 0.0
    %1156 = vmatpush.msra.mxu0 0.0
    %1157 = vmatpush.msra.mxu0 %v1139
    %1158 = vmatpush.msra.mxu0 %v1138
    %1159 = vmatpush.msra.mxu0 %v1137
    %1160 = vmatpush.msra.mxu0 %v1136
    %1161 = vmatmul.f32.gmra.mxu0 %v1143
    %v1162 = vpop.f32.mrf.mxu0
    %v1163 = vadd.f32 %v1141, %v1162
    %1164 = vdwg.mxu0
    %v1166 = vrot.slane %v1163, 7
    %vm1168 = vcmask 1040384
    %v1169 = vsel %vm1168, %v99, %v1166
    %v1170 = vld [vmem:[#allocation8] sm:$0xff]
    %v1171 = vld [vmem:[#allocation8 + $0x10] sm:$0xff]
    %v1172 = vld [vmem:[#allocation8 + $0x20] sm:$0xff]
    %v1173 = vld [vmem:[#allocation8 + $0x30] sm:$0xff]
    %v1174 = vld [vmem:[#allocation10] sm:$0x1]
    %v1176 = vperm.slane %v1174, 0
    %v1179 = vsel %vm107, %v1169, 0
    %v1181 = vsel %vm107, %v1166, 0
    %1183 = vmatpush.msra.mxu0 0.0
    %1184 = vmatpush.msra.mxu0 0.0
    %1185 = vmatpush.msra.mxu0 0.0
    %1186 = vmatpush.msra.mxu0 0.0
    %1187 = vmatpush.msra.mxu0 0.0
    %1188 = vmatpush.msra.mxu0 0.0
    %1189 = vmatpush.msra.mxu0 0.0
    %1190 = vmatpush.msra.mxu0 0.0
    %1191 = vmatpush.msra.mxu0 0.0
    %1192 = vmatpush.msra.mxu0 0.0
    %1193 = vmatpush.msra.mxu0 0.0
    %1194 = vmatpush.msra.mxu0 0.0
    %1195 = vmatpush.msra.mxu0 %v1173
    %1196 = vmatpush.msra.mxu0 %v1172
    %1197 = vmatpush.msra.mxu0 %v1171
    %1198 = vmatpush.msra.mxu0 %v1170
    %1199 = vmatmul.f32.gmra.mxu0 %v1179
    %v1200 = vpop.f32.mrf.mxu0
    %v1201 = vadd.f32 %v1176, %v1200
    %1202 = vmatmul.f32.gmra.mxu0 %v1181
    %v1203 = vpop.f32.mrf.mxu0
    %v1204 = vadd.f32 %v1176, %v1203
    %1205 = vdwg.mxu0
    %1208 = vrot.lane.b32.xlu0 %v1201, 96
    %v1209 = vpop.permute.xlu0 %1208
    %1210 = vrot.lane.b32.xlu0 %v1204, 96
    %v1211 = vpop.permute.xlu0 %1210
    %v1212 = vsel %vm134, %v1201, 0
    %v1214 = vsel %vm134, %v1204, 0
    %v1216 = vsel %vm134, %v1209, 0
    %v1218 = vsel %vm134, %v1211, 0
    %1220 = vmatpush.xpose.msra.mxu0 0.0
    %1221 = vmatpush.xpose.msra.mxu0 0.0
    %1222 = vmatpush.xpose.msra.mxu0 0.0
    %1223 = vmatpush.xpose.msra.mxu0 0.0
    %1224 = vmatpush.xpose.msra.mxu0 0.0
    %1225 = vmatpush.xpose.msra.mxu0 0.0
    %1226 = vmatpush.xpose.msra.mxu0 0.0
    %1227 = vmatpush.xpose.msra.mxu0 0.0
    %1228 = vmatpush.xpose.msra.mxu0 0.0
    %1229 = vmatpush.xpose.msra.mxu0 0.0
    %1230 = vmatpush.xpose.msra.mxu0 0.0
    %1231 = vmatpush.xpose.msra.mxu0 0.0
    %1232 = vmatpush.xpose.msra.mxu0 0.0
    %1233 = vmatpush.xpose.msra.mxu0 0.0
    %1234 = vmatpush.xpose.msra.mxu0 %v1218
    %1235 = vmatpush.xpose.msra.mxu0 %v1216
    %1236 = vmatmul.f32.gmra.mxu0 %v1212
    %v1237 = vpop.f32.mrf.mxu0
    %v1238 = vadd.f32 0.0, %v1237
    %1239 = vmatmul.f32.gmra.mxu0 %v1214
    %v1240 = vpop.f32.mrf.mxu0
    %v1241 = vadd.f32 0.0, %v1240
    %1242 = vdwg.mxu0
    %v1243 = vmul.f32 %v1238, 0.35355338
    %v1244 = vmul.f32 %v1241, 0.35355338
    %vm1245 = vcmask 72704
    %v1246 = vsel %vm1245, %v1243, -inf
    %1247 = vmax.xlane.f32.xlu0 %v1246
    %v1248 = vpop.xlane.xlu0 %1247
    %vm1249 = vcmask 65536
    %v1250 = vsel %vm1249, %v1244, -inf
    %1251 = vmax.xlane.f32.xlu0 %v1250
    %v1252 = vpop.xlane.xlu0 %1251
    %v1253 = vsub.f32 %v1243, %v1248
    %v1254 = vsub.f32 %v1244, %v1252
    %v1255 = vmul.f32 %v1253, 1.442695
    %v1256 = vpow.pop %v1255
    %v1257 = vmul.f32 %v1254, 1.442695
    %v1258 = vpow.pop %v1257
    %v1259 = vsel %vm1245, %v1256, 0.0
    %1260 = vadd.xlane.f32.xlu0 %v1259
    %v1261 = vpop.xlane.xlu0 %1260
    %v1262 = vsel %vm1249, %v1258, 0.0
    %1263 = vadd.xlane.f32.xlu0 %v1262
    %v1264 = vpop.xlane.xlu0 %1263
    %v1265 = vrcp.pop %v1261
    %v1266 = vrcp.pop %v1264
    %v1267 = vmul.f32 %v1256, %v1265
    %v1268 = vmul.f32 %v1258, %v1266
    %1269 = vrot.lane.b32.xlu0 %v1201, 64
    %v1270 = vpop.permute.xlu0 %1269
    %1271 = vrot.lane.b32.xlu0 %v1204, 64
    %v1272 = vpop.permute.xlu0 %1271
    %v1275 = vsel %vm1245, %v1267, 0
    %v1278 = vsel %vm1245, %v1268, 0
    %v1280 = vsel %vm1168, %v1272, 0
    %1282 = vmatpush.msra.mxu0 0.0
    %1283 = vmatpush.msra.mxu0 0.0
    %1284 = vmatpush.msra.mxu0 0.0
    %1285 = vmatpush.msra.mxu0 0.0
    %1286 = vmatpush.msra.mxu0 0.0
    %1287 = vmatpush.msra.mxu0 0.0
    %1288 = vmatpush.msra.mxu0 0.0
    %1289 = vmatpush.msra.mxu0 0.0
    %1290 = vmatpush.msra.mxu0 0.0
    %1291 = vmatpush.msra.mxu0 0.0
    %1292 = vmatpush.msra.mxu0 0.0
    %1293 = vmatpush.msra.mxu0 0.0
    %1294 = vmatpush.msra.mxu0 0.0
    %1295 = vmatpush.msra.mxu0 0.0
    %1296 = vmatpush.msra.mxu0 %v1280
    %1297 = vmatpush.msra.mxu0 %v1270
    %1298 = vmatmul.f32.gmra.mxu0 %v1275
    %v1299 = vpop.f32.mrf.mxu0
    %v1300 = vadd.f32 0.0, %v1299
    %1301 = vmatmul.f32.gmra.mxu0 %v1278
    %v1302 = vpop.f32.mrf.mxu0
    %v1303 = vadd.f32 0.0, %v1302
    %1304 = vdwg.mxu0
    %1305 = vrot.lane.b32.xlu0 %v1201, 120
    %v1306 = vpop.permute.xlu0 %1305
    %1307 = vrot.lane.b32.xlu0 %v1204, 120
    %v1308 = vpop.permute.xlu0 %1307
    %1309 = vrot.lane.b32.xlu0 %v1201, 88
    %v1310 = vpop.permute.xlu0 %1309
    %1311 = vrot.lane.b32.xlu0 %v1204, 88
    %v1312 = vpop.permute.xlu0 %1311
    %v1313 = vsel %vm134, %v1306, 0
    %v1315 = vsel %vm134, %v1308, 0
    %v1317 = vsel %vm134, %v1310, 0
    %v1319 = vsel %vm134, %v1312, 0
    %1321 = vmatpush.xpose.msra.mxu0 0.0
    %1322 = vmatpush.xpose.msra.mxu0 0.0
    %1323 = vmatpush.xpose.msra.mxu0 0.0
    %1324 = vmatpush.xpose.msra.mxu0 0.0
    %1325 = vmatpush.xpose.msra.mxu0 0.0
    %1326 = vmatpush.xpose.msra.mxu0 0.0
    %1327 = vmatpush.xpose.msra.mxu0 0.0
    %1328 = vmatpush.xpose.msra.mxu0 0.0
    %1329 = vmatpush.xpose.msra.mxu0 0.0
    %1330 = vmatpush.xpose.msra.mxu0 0.0
    %1331 = vmatpush.xpose.msra.mxu0 0.0
    %1332 = vmatpush.xpose.msra.mxu0 0.0
    %1333 = vmatpush.xpose.msra.mxu0 0.0
    %1334 = vmatpush.xpose.msra.mxu0 0.0
    %1335 = vmatpush.xpose.msra.mxu0 %v1319
    %1336 = vmatpush.xpose.msra.mxu0 %v1317
    %1337 = vmatmul.f32.gmra.mxu0 %v1313
    %v1338 = vpop.f32.mrf.mxu0
    %v1339 = vadd.f32 0.0, %v1338
    %1340 = vmatmul.f32.gmra.mxu0 %v1315
    %v1341 = vpop.f32.mrf.mxu0
    %v1342 = vadd.f32 0.0, %v1341
    %1343 = vdwg.mxu0
    %v1344 = vmul.f32 %v1339, 0.35355338
    %v1345 = vmul.f32 %v1342, 0.35355338
    %v1346 = vsel %vm1245, %v1344, -inf
    %1347 = vmax.xlane.f32.xlu0 %v1346
    %v1348 = vpop.xlane.xlu0 %1347
    %v1349 = vsel %vm1249, %v1345, -inf
    %1350 = vmax.xlane.f32.xlu0 %v1349
    %v1351 = vpop.xlane.xlu0 %1350
    %v1352 = vsub.f32 %v1344, %v1348
    %v1353 = vsub.f32 %v1345, %v1351
    %v1354 = vmul.f32 %v1352, 1.442695
    %v1355 = vpow.pop %v1354
    %v1356 = vmul.f32 %v1353, 1.442695
    %v1357 = vpow.pop %v1356
    %v1358 = vsel %vm1245, %v1355, 0.0
    %1359 = vadd.xlane.f32.xlu0 %v1358
    %v1360 = vpop.xlane.xlu0 %1359
    %v1361 = vsel %vm1249, %v1357, 0.0
    %1362 = vadd.xlane.f32.xlu0 %v1361
    %v1363 = vpop.xlane.xlu0 %1362
    %v1364 = vrcp.pop %v1360
    %v1365 = vrcp.pop %v1363
    %v1366 = vmul.f32 %v1355, %v1364
    %v1367 = vmul.f32 %v1357, %v1365
    %1368 = vrot.lane.b32.xlu0 %v1201, 56
    %v1369 = vpop.permute.xlu0 %1368
    %1370 = vrot.lane.b32.xlu0 %v1204, 56
    %v1371 = vpop.permute.xlu0 %1370
    %v1374 = vsel %vm1245, %v1366, 0
    %v1377 = vsel %vm1245, %v1367, 0
    %v1379 = vsel %vm1168, %v1371, 0
    %1381 = vmatpush.msra.mxu0 0.0
    %1382 = vmatpush.msra.mxu0 0.0
    %1383 = vmatpush.msra.mxu0 0.0
    %1384 = vmatpush.msra.mxu0 0.0
    %1385 = vmatpush.msra.mxu0 0.0
    %1386 = vmatpush.msra.mxu0 0.0
    %1387 = vmatpush.msra.mxu0 0.0
    %1388 = vmatpush.msra.mxu0 0.0
    %1389 = vmatpush.msra.mxu0 0.0
    %1390 = vmatpush.msra.mxu0 0.0
    %1391 = vmatpush.msra.mxu0 0.0
    %1392 = vmatpush.msra.mxu0 0.0
    %1393 = vmatpush.msra.mxu0 0.0
    %1394 = vmatpush.msra.mxu0 0.0
    %1395 = vmatpush.msra.mxu0 %v1379
    %1396 = vmatpush.msra.mxu0 %v1369
    %1397 = vmatmul.f32.gmra.mxu0 %v1374
    %v1398 = vpop.f32.mrf.mxu0
    %v1399 = vadd.f32 0.0, %v1398
    %1400 = vmatmul.f32.gmra.mxu0 %v1377
    %v1401 = vpop.f32.mrf.mxu0
    %v1402 = vadd.f32 0.0, %v1401
    %1403 = vdwg.mxu0
    %1404 = vrot.lane.b32.xlu0 %v1201, 112
    %v1405 = vpop.permute.xlu0 %1404
    %1406 = vrot.lane.b32.xlu0 %v1204, 112
    %v1407 = vpop.permute.xlu0 %1406
    %1408 = vrot.lane.b32.xlu0 %v1201, 80
    %v1409 = vpop.permute.xlu0 %1408
    %1410 = vrot.lane.b32.xlu0 %v1204, 80
    %v1411 = vpop.permute.xlu0 %1410
    %v1412 = vsel %vm134, %v1405, 0
    %v1414 = vsel %vm134, %v1407, 0
    %v1416 = vsel %vm134, %v1409, 0
    %v1418 = vsel %vm134, %v1411, 0
    %1420 = vmatpush.xpose.msra.mxu0 0.0
    %1421 = vmatpush.xpose.msra.mxu0 0.0
    %1422 = vmatpush.xpose.msra.mxu0 0.0
    %1423 = vmatpush.xpose.msra.mxu0 0.0
    %1424 = vmatpush.xpose.msra.mxu0 0.0
    %1425 = vmatpush.xpose.msra.mxu0 0.0
    %1426 = vmatpush.xpose.msra.mxu0 0.0
    %1427 = vmatpush.xpose.msra.mxu0 0.0
    %1428 = vmatpush.xpose.msra.mxu0 0.0
    %1429 = vmatpush.xpose.msra.mxu0 0.0
    %1430 = vmatpush.xpose.msra.mxu0 0.0
    %1431 = vmatpush.xpose.msra.mxu0 0.0
    %1432 = vmatpush.xpose.msra.mxu0 0.0
    %1433 = vmatpush.xpose.msra.mxu0 0.0
    %1434 = vmatpush.xpose.msra.mxu0 %v1418
    %1435 = vmatpush.xpose.msra.mxu0 %v1416
    %1436 = vmatmul.f32.gmra.mxu0 %v1412
    %v1437 = vpop.f32.mrf.mxu0
    %v1438 = vadd.f32 0.0, %v1437
    %1439 = vmatmul.f32.gmra.mxu0 %v1414
    %v1440 = vpop.f32.mrf.mxu0
    %v1441 = vadd.f32 0.0, %v1440
    %1442 = vdwg.mxu0
    %v1443 = vmul.f32 %v1438, 0.35355338
    %v1444 = vmul.f32 %v1441, 0.35355338
    %v1445 = vsel %vm1245, %v1443, -inf
    %1446 = vmax.xlane.f32.xlu0 %v1445
    %v1447 = vpop.xlane.xlu0 %1446
    %v1448 = vsel %vm1249, %v1444, -inf
    %1449 = vmax.xlane.f32.xlu0 %v1448
    %v1450 = vpop.xlane.xlu0 %1449
    %v1451 = vsub.f32 %v1443, %v1447
    %v1452 = vsub.f32 %v1444, %v1450
    %v1453 = vmul.f32 %v1451, 1.442695
    %v1454 = vpow.pop %v1453
    %v1455 = vmul.f32 %v1452, 1.442695
    %v1456 = vpow.pop %v1455
    %v1457 = vsel %vm1245, %v1454, 0.0
    %1458 = vadd.xlane.f32.xlu0 %v1457
    %v1459 = vpop.xlane.xlu0 %1458
    %v1460 = vsel %vm1249, %v1456, 0.0
    %1461 = vadd.xlane.f32.xlu0 %v1460
    %v1462 = vpop.xlane.xlu0 %1461
    %v1463 = vrcp.pop %v1459
    %v1464 = vrcp.pop %v1462
    %v1465 = vmul.f32 %v1454, %v1463
    %v1466 = vmul.f32 %v1456, %v1464
    %1467 = vrot.lane.b32.xlu0 %v1201, 48
    %v1468 = vpop.permute.xlu0 %1467
    %1469 = vrot.lane.b32.xlu0 %v1204, 48
    %v1470 = vpop.permute.xlu0 %1469
    %v1473 = vsel %vm1245, %v1465, 0
    %v1476 = vsel %vm1245, %v1466, 0
    %v1478 = vsel %vm1168, %v1470, 0
    %1480 = vmatpush.msra.mxu0 0.0
    %1481 = vmatpush.msra.mxu0 0.0
    %1482 = vmatpush.msra.mxu0 0.0
    %1483 = vmatpush.msra.mxu0 0.0
    %1484 = vmatpush.msra.mxu0 0.0
    %1485 = vmatpush.msra.mxu0 0.0
    %1486 = vmatpush.msra.mxu0 0.0
    %1487 = vmatpush.msra.mxu0 0.0
    %1488 = vmatpush.msra.mxu0 0.0
    %1489 = vmatpush.msra.mxu0 0.0
    %1490 = vmatpush.msra.mxu0 0.0
    %1491 = vmatpush.msra.mxu0 0.0
    %1492 = vmatpush.msra.mxu0 0.0
    %1493 = vmatpush.msra.mxu0 0.0
    %1494 = vmatpush.msra.mxu0 %v1478
    %1495 = vmatpush.msra.mxu0 %v1468
    %1496 = vmatmul.f32.gmra.mxu0 %v1473
    %v1497 = vpop.f32.mrf.mxu0
    %v1498 = vadd.f32 0.0, %v1497
    %1499 = vmatmul.f32.gmra.mxu0 %v1476
    %v1500 = vpop.f32.mrf.mxu0
    %v1501 = vadd.f32 0.0, %v1500
    %1502 = vdwg.mxu0
    %1503 = vrot.lane.b32.xlu0 %v1201, 104
    %v1504 = vpop.permute.xlu0 %1503
    %1505 = vrot.lane.b32.xlu0 %v1204, 104
    %v1506 = vpop.permute.xlu0 %1505
    %1507 = vrot.lane.b32.xlu0 %v1201, 72
    %v1508 = vpop.permute.xlu0 %1507
    %1509 = vrot.lane.b32.xlu0 %v1204, 72
    %v1510 = vpop.permute.xlu0 %1509
    %v1511 = vsel %vm134, %v1504, 0
    %v1513 = vsel %vm134, %v1506, 0
    %v1515 = vsel %vm134, %v1508, 0
    %v1517 = vsel %vm134, %v1510, 0
    %1519 = vmatpush.xpose.msra.mxu0 0.0
    %1520 = vmatpush.xpose.msra.mxu0 0.0
    %1521 = vmatpush.xpose.msra.mxu0 0.0
    %1522 = vmatpush.xpose.msra.mxu0 0.0
    %1523 = vmatpush.xpose.msra.mxu0 0.0
    %1524 = vmatpush.xpose.msra.mxu0 0.0
    %1525 = vmatpush.xpose.msra.mxu0 0.0
    %1526 = vmatpush.xpose.msra.mxu0 0.0
    %1527 = vmatpush.xpose.msra.mxu0 0.0
    %1528 = vmatpush.xpose.msra.mxu0 0.0
    %1529 = vmatpush.xpose.msra.mxu0 0.0
    %1530 = vmatpush.xpose.msra.mxu0 0.0
    %1531 = vmatpush.xpose.msra.mxu0 0.0
    %1532 = vmatpush.xpose.msra.mxu0 0.0
    %1533 = vmatpush.xpose.msra.mxu0 %v1517
    %1534 = vmatpush.xpose.msra.mxu0 %v1515
    %1535 = vmatmul.f32.gmra.mxu0 %v1511
    %v1536 = vpop.f32.mrf.mxu0
    %v1537 = vadd.f32 0.0, %v1536
    %1538 = vmatmul.f32.gmra.mxu0 %v1513
    %v1539 = vpop.f32.mrf.mxu0
    %v1540 = vadd.f32 0.0, %v1539
    %1541 = vdwg.mxu0
    %v1542 = vmul.f32 %v1537, 0.35355338
    %v1543 = vmul.f32 %v1540, 0.35355338
    %v1544 = vsel %vm1245, %v1542, -inf
    %1545 = vmax.xlane.f32.xlu0 %v1544
    %v1546 = vpop.xlane.xlu0 %1545
    %v1547 = vsel %vm1249, %v1543, -inf
    %1548 = vmax.xlane.f32.xlu0 %v1547
    %v1549 = vpop.xlane.xlu0 %1548
    %v1550 = vsub.f32 %v1542, %v1546
    %v1551 = vsub.f32 %v1543, %v1549
    %v1552 = vmul.f32 %v1550, 1.442695
    %v1553 = vpow.pop %v1552
    %v1554 = vmul.f32 %v1551, 1.442695
    %v1555 = vpow.pop %v1554
    %v1556 = vsel %vm1245, %v1553, 0.0
    %1557 = vadd.xlane.f32.xlu0 %v1556
    %v1558 = vpop.xlane.xlu0 %1557
    %v1559 = vsel %vm1249, %v1555, 0.0
    %1560 = vadd.xlane.f32.xlu0 %v1559
    %v1561 = vpop.xlane.xlu0 %1560
    %v1562 = vrcp.pop %v1558
    %v1563 = vrcp.pop %v1561
    %v1564 = vmul.f32 %v1553, %v1562
    %v1565 = vmul.f32 %v1555, %v1563
    %1566 = vrot.lane.b32.xlu0 %v1201, 40
    %v1567 = vpop.permute.xlu0 %1566
    %1568 = vrot.lane.b32.xlu0 %v1204, 40
    %v1569 = vpop.permute.xlu0 %1568
    %v1572 = vsel %vm1245, %v1564, 0
    %v1575 = vsel %vm1245, %v1565, 0
    %v1577 = vsel %vm1168, %v1569, 0
    %1579 = vmatpush.msra.mxu0 0.0
    %1580 = vmatpush.msra.mxu0 0.0
    %1581 = vmatpush.msra.mxu0 0.0
    %1582 = vmatpush.msra.mxu0 0.0
    %1583 = vmatpush.msra.mxu0 0.0
    %1584 = vmatpush.msra.mxu0 0.0
    %1585 = vmatpush.msra.mxu0 0.0
    %1586 = vmatpush.msra.mxu0 0.0
    %1587 = vmatpush.msra.mxu0 0.0
    %1588 = vmatpush.msra.mxu0 0.0
    %1589 = vmatpush.msra.mxu0 0.0
    %1590 = vmatpush.msra.mxu0 0.0
    %1591 = vmatpush.msra.mxu0 0.0
    %1592 = vmatpush.msra.mxu0 0.0
    %1593 = vmatpush.msra.mxu0 %v1577
    %1594 = vmatpush.msra.mxu0 %v1567
    %1595 = vmatmul.f32.gmra.mxu0 %v1572
    %v1596 = vpop.f32.mrf.mxu0
    %v1597 = vadd.f32 0.0, %v1596
    %1598 = vmatmul.f32.gmra.mxu0 %v1575
    %v1599 = vpop.f32.mrf.mxu0
    %v1600 = vadd.f32 0.0, %v1599
    %1601 = vdwg.mxu0
    %1604 = vrot.lane.b32.xlu0 %v1399, 8
    %v1605 = vpop.permute.xlu0 %1604
    %1606 = vrot.lane.b32.xlu0 %v1402, 8
    %v1607 = vpop.permute.xlu0 %1606
    %1612 = vrot.lane.b32.xlu0 %v1498, 16
    %v1613 = vpop.permute.xlu0 %1612
    %1614 = vrot.lane.b32.xlu0 %v1501, 16
    %v1615 = vpop.permute.xlu0 %1614
    %1620 = vrot.lane.b32.xlu0 %v1597, 24
    %v1621 = vpop.permute.xlu0 %1620
    %1622 = vrot.lane.b32.xlu0 %v1600, 24
    %v1623 = vpop.permute.xlu0 %1622
    %v1626 = vsel %vm134, %v1300, %v1605
    %v1627 = vsel %vm134, %v1303, %v1607
    %v1628 = vsel %vm408, %v1626, %v1613
    %v1629 = vsel %vm408, %v1627, %v1615
    %v1630 = vsel %vm410, %v1628, %v1621
    %v1631 = vsel %vm410, %v1629, %v1623
    %1636 = vrot.lane.b32.xlu0 %v1170, 32
    %v1637 = vpop.permute.xlu0 %1636
    %1638 = vrot.lane.b32.xlu0 %v1171, 32
    %v1639 = vpop.permute.xlu0 %1638
    %1640 = vrot.lane.b32.xlu0 %v1172, 32
    %v1641 = vpop.permute.xlu0 %1640
    %1642 = vrot.lane.b32.xlu0 %v1173, 32
    %v1643 = vpop.permute.xlu0 %1642
    %1648 = vrot.lane.b32.xlu0 %v1176, 32
    %v1649 = vpop.permute.xlu0 %1648
    %v1652 = vsel %vm107, %v1630, 0
    %v1655 = vsel %vm107, %v1631, 0
    %1657 = vmatpush.msra.mxu0 0.0
    %1658 = vmatpush.msra.mxu0 0.0
    %1659 = vmatpush.msra.mxu0 0.0
    %1660 = vmatpush.msra.mxu0 0.0
    %1661 = vmatpush.msra.mxu0 0.0
    %1662 = vmatpush.msra.mxu0 0.0
    %1663 = vmatpush.msra.mxu0 0.0
    %1664 = vmatpush.msra.mxu0 0.0
    %1665 = vmatpush.msra.mxu0 0.0
    %1666 = vmatpush.msra.mxu0 0.0
    %1667 = vmatpush.msra.mxu0 0.0
    %1668 = vmatpush.msra.mxu0 0.0
    %1669 = vmatpush.msra.mxu0 %v1643
    %1670 = vmatpush.msra.mxu0 %v1641
    %1671 = vmatpush.msra.mxu0 %v1639
    %1672 = vmatpush.msra.mxu0 %v1637
    %1673 = vmatmul.f32.gmra.mxu0 %v1652
    %v1674 = vpop.f32.mrf.mxu0
    %v1675 = vadd.f32 %v1649, %v1674
    %1676 = vmatmul.f32.gmra.mxu0 %v1655
    %v1677 = vpop.f32.mrf.mxu0
    %v1678 = vadd.f32 %v1649, %v1677
    %1679 = vdwg.mxu0
    %v1680 = vld [vmem:[#allocation10 + $0x1] sm:$0x1]
    %v1681 = vadd.f32 %v1169, %v1675
    %v1682 = vadd.f32 %v1166, %v1678
    %v1683 = vsel %vm107, %v1681, 0.0
    %1684 = vadd.xlane.f32.xlu0 %v1683
    %v1685 = vpop.xlane.xlu0 %1684
    %vm1686 = vcmask 253952
    %v1687 = vsel %vm1686, %v1682, 0.0
    %1688 = vadd.xlane.f32.xlu0 %v1687
    %v1689 = vpop.xlane.xlu0 %1688
    %v1690 = vmul.f32 %v1685, %v466
    %v1691 = vmul.f32 %v1689, %v466
    %v1692 = vsub.f32 %v1681, %v1690
    %v1693 = vsub.f32 %v1682, %v1691
    %v1694 = vmul.f32 %v1692, %v1692
    %v1695 = vmul.f32 %v1693, %v1693
    %v1696 = vsel %vm107, %v1694, 0.0
    %1697 = vadd.xlane.f32.xlu0 %v1696
    %v1698 = vpop.xlane.xlu0 %1697
    %v1699 = vsel %vm1686, %v1695, 0.0
    %1700 = vadd.xlane.f32.xlu0 %v1699
    %v1701 = vpop.xlane.xlu0 %1700
    %v1702 = vmul.f32 %v1698, %v466
    %v1703 = vmul.f32 %v1701, %v466
    %v1704 = vadd.f32 %v1702, 1e-05
    %v1705 = vadd.f32 %v1703, 1e-05
    %v1706 = vrsqrt.pop %v1704
    %v1707 = vmul.f32 %v1706, %v1704
    %v1708 = vmul.f32 %v1707, %v1706
    %v1709 = vmul.f32 0.5, %v1708
    %v1710 = vsub.f32 1.5, %v1709
    %v1711 = vmul.f32 %v1706, %v1710
    %vm1712 = vweird.f32 %v1704
    %vm1713 = vweird.f32 %v1706
    %vm1714 = vmor %vm1712, %vm1713
    %v1715 = vsel %vm1714, %v1706, %v1711
    %v1716 = vrsqrt.pop %v1705
    %v1717 = vmul.f32 %v1716, %v1705
    %v1718 = vmul.f32 %v1717, %v1716
    %v1719 = vmul.f32 0.5, %v1718
    %v1720 = vsub.f32 1.5, %v1719
    %v1721 = vmul.f32 %v1716, %v1720
    %vm1722 = vweird.f32 %v1705
    %vm1723 = vweird.f32 %v1716
    %vm1724 = vmor %vm1722, %vm1723
    %v1725 = vsel %vm1724, %v1716, %v1721
    %v1726 = vmul.f32 %v1692, %v1715
    %v1727 = vmul.f32 %v1693, %v1725
    %v1729 = vperm.slane %v1680, 0
    %v1731 = vmul.f32 %v1726, %v1729
    %v1732 = vmul.f32 %v1727, %v1729
    %1733 = vrot.lane.b32.xlu0 %v1729, 96
    %v1734 = vpop.permute.xlu0 %1733
    %v1736 = vadd.f32 %v1731, %v1734
    %v1737 = vadd.f32 %v1732, %v1734
    %v1738 = vld [vmem:[#allocation8 + $0x8] sm:$0xff]
    %v1739 = vld [vmem:[#allocation8 + $0x18] sm:$0xff]
    %v1740 = vld [vmem:[#allocation8 + $0x28] sm:$0xff]
    %v1741 = vld [vmem:[#allocation8 + $0x38] sm:$0xff]
    %1742 = vrot.lane.b32.xlu0 %v1729, 64
    %v1743 = vpop.permute.xlu0 %1742
    %v1746 = vsel %vm107, %v1736, 0
    %v1749 = vsel %vm107, %v1737, 0
    %1751 = vmatpush.msra.mxu0 0.0
    %1752 = vmatpush.msra.mxu0 0.0
    %1753 = vmatpush.msra.mxu0 0.0
    %1754 = vmatpush.msra.mxu0 0.0
    %1755 = vmatpush.msra.mxu0 0.0
    %1756 = vmatpush.msra.mxu0 0.0
    %1757 = vmatpush.msra.mxu0 0.0
    %1758 = vmatpush.msra.mxu0 0.0
    %1759 = vmatpush.msra.mxu0 0.0
    %1760 = vmatpush.msra.mxu0 0.0
    %1761 = vmatpush.msra.mxu0 0.0
    %1762 = vmatpush.msra.mxu0 0.0
    %1763 = vmatpush.msra.mxu0 %v1741
    %1764 = vmatpush.msra.mxu0 %v1740
    %1765 = vmatpush.msra.mxu0 %v1739
    %1766 = vmatpush.msra.mxu0 %v1738
    %1767 = vmatmul.f32.gmra.mxu0 %v1746
    %v1768 = vpop.f32.mrf.mxu0
    %v1769 = vadd.f32 %v1743, %v1768
    %1770 = vmatmul.f32.gmra.mxu0 %v1749
    %v1771 = vpop.f32.mrf.mxu0
    %v1772 = vadd.f32 %v1743, %v1771
    %1773 = vdwg.mxu0
    %v1774 = vld [vmem:[#allocation10 + $0x2] sm:$0x1]
    %v1775 = vadd.f32 %v1736, %v1769
    %v1776 = vadd.f32 %v1737, %v1772
    %v1777 = vsel %vm107, %v1775, 0.0
    %1778 = vadd.xlane.f32.xlu0 %v1777
    %v1779 = vpop.xlane.xlu0 %1778
    %v1780 = vsel %vm1686, %v1776, 0.0
    %1781 = vadd.xlane.f32.xlu0 %v1780
    %v1782 = vpop.xlane.xlu0 %1781
    %v1783 = vmul.f32 %v1779, %v466
    %v1784 = vmul.f32 %v1782, %v466
    %v1785 = vsub.f32 %v1775, %v1783
    %v1786 = vsub.f32 %v1776, %v1784
    %v1787 = vmul.f32 %v1785, %v1785
    %v1788 = vmul.f32 %v1786, %v1786
    %v1789 = vsel %vm107, %v1787, 0.0
    %1790 = vadd.xlane.f32.xlu0 %v1789
    %v1791 = vpop.xlane.xlu0 %1790
    %v1792 = vsel %vm1686, %v1788, 0.0
    %1793 = vadd.xlane.f32.xlu0 %v1792
    %v1794 = vpop.xlane.xlu0 %1793
    %v1795 = vmul.f32 %v1791, %v466
    %v1796 = vmul.f32 %v1794, %v466
    %v1797 = vadd.f32 %v1795, 1e-05
    %v1798 = vadd.f32 %v1796, 1e-05
    %v1799 = vrsqrt.pop %v1797
    %v1800 = vmul.f32 %v1799, %v1797
    %v1801 = vmul.f32 %v1800, %v1799
    %v1802 = vmul.f32 0.5, %v1801
    %v1803 = vsub.f32 1.5, %v1802
    %v1804 = vmul.f32 %v1799, %v1803
    %vm1805 = vweird.f32 %v1797
    %vm1806 = vweird.f32 %v1799
    %vm1807 = vmor %vm1805, %vm1806
    %v1808 = vsel %vm1807, %v1799, %v1804
    %v1809 = vrsqrt.pop %v1798
    %v1810 = vmul.f32 %v1809, %v1798
    %v1811 = vmul.f32 %v1810, %v1809
    %v1812 = vmul.f32 0.5, %v1811
    %v1813 = vsub.f32 1.5, %v1812
    %v1814 = vmul.f32 %v1809, %v1813
    %vm1815 = vweird.f32 %v1798
    %vm1816 = vweird.f32 %v1809
    %vm1817 = vmor %vm1815, %vm1816
    %v1818 = vsel %vm1817, %v1809, %v1814
    %v1819 = vmul.f32 %v1785, %v1808
    %v1820 = vmul.f32 %v1786, %v1818
    %1821 = vrot.lane.b32.xlu0 %v1729, 32
    %v1822 = vpop.permute.xlu0 %1821
    %v1824 = vmul.f32 %v1819, %v1822
    %v1825 = vmul.f32 %v1820, %v1822
    %v1827 = vperm.slane %v1774, 0
    %v1829 = vadd.f32 %v1824, %v1827
    %v1830 = vadd.f32 %v1825, %v1827
    %1831 = vst.msk [vmem:[#allocation11] sm:$0x1] %vm1686, %v1829
    %vm1832 = vcmask 261121
    %1833 = vst.msk [vmem:[#allocation12 - $0x1] sm:$0xfe] %vm1832, %v1829
    %1834 = vst.msk [vmem:[#allocation12 + $0x7] sm:$0x1] %vm1686, %v1830
    // Predicated region
    $region46: #{encoder_layer_fwd.1} parent=1 // pred_check
      _
    $region47: #{encoder_layer_fwd.1} parent=1 // pred_check_branch
      %1836 = sbr.rel (0) target = $region49
    $region48: #{encoder_layer_fwd.1} parent=1 // pred_region
      %1838 = vsyncadd [#allocation4], 0
      %s1840 = sshll.u32 [#allocation11], 4
      %s1841 = int_to_ptr.vmem [resolvable:$true] %s1840
      %s1842 = sshll.u32 %s6, 4
      %s1843 = int_to_ptr.hbm [resolvable:$true] %s1842
      %1845 = dma.vmem_to_hbm [thread:$0]  %s1841, 16, %s1843, [#allocation4]
    $region49: #{encoder_layer_fwd.1} parent=1 // pred_fallthru
      _
    // Predicated region
    $region50: #{encoder_layer_fwd.1} parent=1 // pred_check
      _
    $region51: #{encoder_layer_fwd.1} parent=1 // pred_check_branch
      %1847 = sbr.rel (0) target = $region53
    $region52: #{encoder_layer_fwd.1} parent=1 // pred_region
      %1849 = vsyncadd [#allocation13], 0
      %s1851 = sshll.u32 [#allocation12], 4
      %s1852 = int_to_ptr.vmem [resolvable:$true] %s1851
      %s1853 = sshll.u32 %s7, 4
      %s1854 = int_to_ptr.hbm [resolvable:$true] %s1853
      %1856 = dma.vmem_to_hbm [thread:$0]  %s1852, 128, %s1854, [#allocation13]
    $region53: #{encoder_layer_fwd.1} parent=1 // pred_fallthru
      _
    // Predicated region
    $region54: #{encoder_layer_fwd.1} parent=1 // pred_check
      _
    $region55: #{encoder_layer_fwd.1} parent=1 // pred_check_branch
      %1858 = sbr.rel (0) target = $region57
    $region56: #{encoder_layer_fwd.1} parent=1 // pred_region
      %1860 = dma.done [#allocation4], 16
    $region57: #{encoder_layer_fwd.1} parent=1 // pred_fallthru
      _
    // Predicated region
    $region58: #{encoder_layer_fwd.1} parent=1 // pred_check
      _
    $region59: #{encoder_layer_fwd.1} parent=1 // pred_check_branch
      %1862 = sbr.rel (0) target = $region61
    $region60: #{encoder_layer_fwd.1} parent=1 // pred_region
      %1864 = dma.done [#allocation13], 128
    $region61: #{encoder_layer_fwd.1} parent=1 // pred_fallthru
      _
    %1865 = vsyncpa [#allocation3], 1
    %1866 = vsyncpa [#allocation6], 1
    %1867 = vsyncpa [#allocation9], 1
    %1868 = vsyncpa [#allocation4], 1
    %1869 = vsyncpa [#allocation13], 1

</llo_original>
